<compile_context>
chip_gen: v7x
topology: tpu7x:2x2x1
jax: 0.10.0
libtpu: 0.0.40
codegen_flags: <defaults>
</compile_context>

<pallas_src>
import functools

import jax
import jax.numpy as jnp
from jax.experimental import pallas as pl
from jax.experimental.pallas import tpu as pltpu

_LANE = 128


def _round_up(x, m):
    return (x + m - 1) // m * m


def _pick_row_tile(ho, wo, cout_p, *, m_target=256, acc_budget_bytes=192 * 1024):
    """Row-tile height: TH*Wo ~ m_target and f32 accumulator within budget."""
    m_cap = max(1, acc_budget_bytes // (cout_p * 4))
    rows = max(1, min(m_target, m_cap) // max(1, wo))
    rows = min(rows, ho)
    if rows >= 8:
        rows -= rows % 8          # sublane-friendly row offsets
    return max(1, rows)


def _conv_stats_kernel(x_ref, w_ref, y_ref, stats_ref, *, kh, kw, dilation, ho_valid):
    """Dilated-conv row tile + BN partial-statistics epilogue.

    x_ref:     (1, H_in_pad, W_in, K_p)   bf16, resident per batch element
    w_ref:     (kh*kw, K_p, Cout_p)       bf16, resident across the whole grid
    y_ref:     (1, TH, Wo, Cout_p)        bf16 conv output tile
    stats_ref: (1, 1, 2, Cout_p)          f32  [channel sum, centered sum-of-squares]
    """
    _, th, wo, cout = y_ref.shape
    t = pl.program_id(1)
    r0 = pl.multiple_of(t * th, th)

    # ---- conv: ref-side offsets per tap, acc initialized from the first tap ----
    acc = None
    for i in range(kh):
        for j in range(kw):
            patch = x_ref[0, pl.ds(r0 + i * dilation, th),
                          pl.ds(j * dilation, wo), :]              # (TH, Wo, K_p)
            w_ij = w_ref[i * kw + j]                               # (K_p, Cout_p)
            part = jax.lax.dot_general(
                patch, w_ij,
                dimension_numbers=(((2,), (0,)), ((), ())),
                preferred_element_type=jnp.float32)
            acc = part if acc is None else acc + part              # (TH, Wo, Cout_p) f32

    y_ref[...] = acc[None].astype(y_ref.dtype)

    # ---- BN statistics epilogue (per-tile sum / centered sum-of-squares) ----
    if ho_valid is None:                       # every row of the tile is valid
        cnt = float(th * wo)
        s = jnp.sum(acc, axis=(0, 1))                              # (Cout_p,)
        d = acc - (s / cnt)[None, None, :]
        m2 = jnp.sum(d * d, axis=(0, 1))
    else:                                      # ragged last tile: mask padded rows
        row = jax.lax.broadcasted_iota(jnp.int32, acc.shape, 0) + r0
        mask = row < ho_valid
        nrows = jnp.minimum(th, ho_valid - r0).astype(jnp.float32)
        cnt = nrows * float(wo)
        acc_m = jnp.where(mask, acc, 0.0)
        s = jnp.sum(acc_m, axis=(0, 1))
        d = jnp.where(mask, acc - (s / cnt)[None, None, :], 0.0)
        m2 = jnp.sum(d * d, axis=(0, 1))

    stats_ref[0, 0, 0:1, :] = s[None, :]       # two plain row stores, no concat
    stats_ref[0, 0, 1:2, :] = m2[None, :]


def _bn_relu_kernel(y_ref, scale_ref, shift_ref, o_ref):
    # y_ref/o_ref: (1, TH_bn, Wo, Cout_p) bf16 (aliased); scale/shift: (1,1,1,Cout_p) f32
    y = y_ref[...].astype(jnp.float32)
    o_ref[...] = jnp.maximum(y * scale_ref[...] + shift_ref[...], 0.0).astype(o_ref.dtype)


def aspp_module_forward(x_nchw, weight_oihw, gamma, beta, *, padding, dilation, eps=1e-5):
    """Forward pass of _ASPPModule.  x_nchw: (N, Cin, H, W) float32 -> (N, Cout, H', W')."""
    N, Cin, H, W = x_nchw.shape
    Cout, _, KH, KW = weight_oihw.shape

    Hp, Wp = H + 2 * padding, W + 2 * padding
    Ho = Hp - dilation * (KH - 1)
    Wo = Wp - dilation * (KW - 1)
    Cout_p = _round_up(Cout, _LANE)

    # Small-channel fast path: fold all taps into one K<=128 contraction.
    use_im2col = (KH * KW * Cin) <= _LANE

    x = jnp.transpose(x_nchw, (0, 2, 3, 1))                         # NHWC f32
    if use_im2col:
        K = KH * KW * Cin
        K_p = _LANE
        xp = jnp.pad(x, ((0, 0), (padding, padding), (padding, padding), (0, 0)))
        taps = [xp[:, i * dilation:i * dilation + Ho, j * dilation:j * dilation + Wo, :]
                for i in range(KH) for j in range(KW)]
        x_eff = jnp.concatenate(taps, axis=-1)                      # (N, Ho, Wo, K)
        x_eff = jnp.pad(x_eff, ((0, 0), (0, 0), (0, 0), (0, K_p - K)))
        # W_mat[k, o] with k = (i*KW + j)*Cin + c  <->  weight[o, c, i, j]
        w_eff = jnp.transpose(weight_oihw, (2, 3, 1, 0)).reshape(K, Cout)
        w_eff = jnp.pad(w_eff, ((0, K_p - K), (0, Cout_p - Cout)))[None]    # (1, K_p, Cout_p)
        kh_eff, kw_eff, dil_eff = 1, 1, 1
        H_in, W_in = Ho, Wo
    else:
        K_p = _round_up(Cin, _LANE)
        x_eff = jnp.pad(x, ((0, 0), (padding, padding), (padding, padding),
                            (0, K_p - Cin)))                        # (N, Hp, Wp, K_p)
        w_eff = jnp.transpose(weight_oihw, (2, 3, 1, 0))            # (KH, KW, Cin, Cout)
        w_eff = jnp.pad(w_eff, ((0, 0), (0, 0), (0, K_p - Cin), (0, Cout_p - Cout)))
        w_eff = w_eff.reshape(KH * KW, K_p, Cout_p)
        kh_eff, kw_eff, dil_eff = KH, KW, dilation
        H_in, W_in = Hp, Wp

    TH = _pick_row_tile(Ho, Wo, Cout_p)
    T = pl.cdiv(Ho, TH)
    Ho_pad = T * TH
    H_in_pad = Ho_pad + dil_eff * (kh_eff - 1)
    ragged = Ho_pad != Ho

    x_eff = jnp.pad(x_eff, ((0, 0), (0, H_in_pad - H_in), (0, 0), (0, 0)))
    x_eff = x_eff.astype(jnp.bfloat16)
    w_eff = w_eff.astype(jnp.bfloat16)

    cparams = pltpu.CompilerParams(
        dimension_semantics=("parallel", "parallel"),
        vmem_limit_bytes=48 * 1024 * 1024)

    # ---- kernel 1: dilated conv + per-tile BN statistics, grid (N, row-tiles) ----
    conv_out, stats = pl.pallas_call(
        functools.partial(_conv_stats_kernel, kh=kh_eff, kw=kw_eff,
                          dilation=dil_eff, ho_valid=(Ho if ragged else None)),
        out_shape=(jax.ShapeDtypeStruct((N, Ho_pad, Wo, Cout_p), jnp.bfloat16),
                   jax.ShapeDtypeStruct((N, T, 2, Cout_p), jnp.float32)),
        grid=(N, T),
        in_specs=[
            pl.BlockSpec((1, H_in_pad, W_in, K_p), lambda n, t: (n, 0, 0, 0)),
            pl.BlockSpec((kh_eff * kw_eff, K_p, Cout_p), lambda n, t: (0, 0, 0)),
        ],
        out_specs=(
            pl.BlockSpec((1, TH, Wo, Cout_p), lambda n, t: (n, t, 0, 0)),
            pl.BlockSpec((1, 1, 2, Cout_p), lambda n, t: (n, t, 0, 0)),
        ),
        compiler_params=cparams,
    )(x_eff, w_eff)

    # ---- merge per-tile stats (Chan's parallel-variance combine), plain JAX ----
    rows_t = jnp.minimum(TH, Ho - jnp.arange(T) * TH).astype(jnp.float32)   # (T,)
    cnt = (rows_t * float(Wo))[None, :, None]                               # (1, T, 1)
    total = float(N * Ho * Wo)
    s_t = stats[:, :, 0, :]                                                 # (N, T, Cout_p)
    m2_t = stats[:, :, 1, :]
    mean = jnp.sum(s_t, axis=(0, 1)) / total                                # (Cout_p,)
    mu_t = s_t / cnt
    M2 = jnp.sum(m2_t, axis=(0, 1)) + \
        jnp.sum(cnt * jnp.square(mu_t - mean[None, None, :]), axis=(0, 1))
    var = jnp.maximum(M2 / total, 0.0)          # biased variance (BN training fwd)

    gamma_p = jnp.pad(gamma.astype(jnp.float32), (0, Cout_p - Cout), constant_values=1.0)
    beta_p = jnp.pad(beta.astype(jnp.float32), (0, Cout_p - Cout))
    inv = jax.lax.rsqrt(var + eps)
    scale = (gamma_p * inv).reshape(1, 1, 1, Cout_p)
    shift = (beta_p - mean * gamma_p * inv).reshape(1, 1, 1, Cout_p)

    # ---- kernel 2: normalize + affine + ReLU, big no-halo blocks, aliased ----
    bytes_per_row = Wo * Cout_p * 2 * 2                     # bf16 in + bf16 out
    budget = 4 * 1024 * 1024
    k_bn = 1
    for k in range(T, 0, -1):
        if T % k == 0 and k * TH * bytes_per_row <= budget:
            k_bn = k
            break
    TH_bn, T_bn = k_bn * TH, T // k_bn

    bn_out = pl.pallas_call(
        _bn_relu_kernel,
        out_shape=jax.ShapeDtypeStruct((N, Ho_pad, Wo, Cout_p), jnp.bfloat16),
        grid=(N, T_bn),
        in_specs=[
            pl.BlockSpec((1, TH_bn, Wo, Cout_p), lambda n, t: (n, t, 0, 0)),
            pl.BlockSpec((1, 1, 1, Cout_p), lambda n, t: (0, 0, 0, 0)),
            pl.BlockSpec((1, 1, 1, Cout_p), lambda n, t: (0, 0, 0, 0)),
        ],
        out_specs=pl.BlockSpec((1, TH_bn, Wo, Cout_p), lambda n, t: (n, t, 0, 0)),
        input_output_aliases={0: 0},
        compiler_params=cparams,
    )(conv_out, scale, shift)

    out = bn_out[:, :Ho, :, :Cout].astype(jnp.float32)      # strip row/lane padding
    return jnp.transpose(out, (0, 3, 1, 2))                 # back to NCHW


def _reference(x_nchw, weight_oihw, gamma, beta, *, padding, dilation, eps=1e-5):
    """Plain-JAX reference (bf16 conv operands, f32 BN) matching the module semantics."""
    x = jnp.transpose(x_nchw, (0, 2, 3, 1)).astype(jnp.bfloat16)
    w = jnp.transpose(weight_oihw, (2, 3, 1, 0)).astype(jnp.bfloat16)   # HWIO
    y = jax.lax.conv_general_dilated(
        x, w, window_strides=(1, 1),
        padding=[(padding, padding), (padding, padding)],
        rhs_dilation=(dilation, dilation),
        dimension_numbers=('NHWC', 'HWIO', 'NHWC'),
        preferred_element_type=jnp.float32)
    mean = jnp.mean(y, axis=(0, 1, 2), keepdims=True)
    var = jnp.mean(jnp.square(y - mean), axis=(0, 1, 2), keepdims=True)
    out = (y - mean) * jax.lax.rsqrt(var + eps) * gamma + beta
    out = jnp.maximum(out, 0.0)
    return jnp.transpose(out, (0, 3, 1, 2))


if __name__ == "__main__":
    def run_case(key, *, N, Cin, Cout, H, W, ksize, padding, dilation):
        kx, kw_, kg, kb = jax.random.split(key, 4)
        x = jax.random.normal(kx, (N, Cin, H, W), dtype=jnp.float32)
        weight = 0.1 * jax.random.normal(kw_, (Cout, Cin, ksize, ksize), dtype=jnp.float32)
        gamma = 1.0 + 0.1 * jax.random.normal(kg, (Cout,), dtype=jnp.float32)
        beta = 0.05 * jax.random.normal(kb, (Cout,), dtype=jnp.float32)

        fwd = jax.jit(functools.partial(aspp_module_forward,
                                        padding=padding, dilation=dilation))
        out = fwd(x, weight, gamma, beta)
        jax.block_until_ready(out)
        assert out.shape == (N, Cout, H, W), out.shape

        ref = _reference(x, weight, gamma, beta, padding=padding, dilation=dilation)
        jax.block_until_ready(ref)
        # tolerance covers bf16 conv-intermediate + bf16 BN-output rounding
        assert bool(jnp.allclose(out, ref, atol=3e-2, rtol=3e-2)), \
            float(jnp.max(jnp.abs(out - ref)))

    key = jax.random.PRNGKey(0)
    k1, k2 = jax.random.split(key)

    # Case 1: small channels -> im2col fast path (KH*KW*Cin <= 128), even tiles.
    run_case(k1, N=2, Cin=4, Cout=8, H=16, W=16, ksize=3, padding=2, dilation=2)
    # Case 2: general per-tap path (KH*KW*Cin > 128) with a ragged last row tile.
    run_case(k2, N=1, Cin=16, Cout=8, H=17, W=17, ksize=3, padding=2, dilation=2)

    print("KERNEL_OK")
</pallas_src>

<mosaic_0001>
module attributes {stable_mosaic.version = 11 : i64} {
  func.func @_conv_stats_kernel(%arg0: i32, %arg1: i32, %arg2: memref<1x16x16x128xbf16, #tpu.memory_space<vmem>>, %arg3: memref<1x128x128xbf16, #tpu.memory_space<vmem>>, %arg4: memref<1x16x16x128xbf16, #tpu.memory_space<vmem>>, %arg5: memref<1x1x2x128xf32, #tpu.memory_space<vmem>>) attributes {dimension_semantics = [#tpu.dimension_semantics<parallel>, #tpu.dimension_semantics<parallel>], iteration_bounds = array<i64: 2, 1>, scalar_prefetch = 0 : i64, scratch_operands = 0 : i64, tpu.core_type = #tpu.core_type<tc>, window_params = [{transform_indices = @transform_0, window_bounds = array<i64: 1, 16, 16, 128>}, {pipeline_mode = #tpu.pipeline_mode<synchronous>, transform_indices = @transform_1, window_bounds = array<i64: 1, 128, 128>}, {transform_indices = @transform_2, window_bounds = array<i64: 1, 16, 16, 128>}, {transform_indices = @transform_3, window_bounds = array<i64: 1, 1, 2, 128>}]} {
    %c16_i32 = arith.constant 16 : i32
    %0 = arith.muli %arg1, %c16_i32 : i32
    %1 = tpu.assume_multiple %0, 16 : i32
    %c0_i32 = arith.constant 0 : i32
    %2 = arith.addi %1, %c0_i32 : i32
    %c0 = arith.constant 0 : index
    %3 = arith.index_cast %2 : i32 to index
    %c0_0 = arith.constant 0 : index
    %c0_1 = arith.constant 0 : index
    %4 = vector.load %arg2[%c0, %3, %c0_0, %c0_1] : memref<1x16x16x128xbf16, #tpu.memory_space<vmem>>, vector<1x16x16x128xbf16>
    %5 = vector.shape_cast %4 : vector<1x16x16x128xbf16> to vector<16x16x128xbf16>
    %c0_2 = arith.constant 0 : index
    %c0_3 = arith.constant 0 : index
    %c0_4 = arith.constant 0 : index
    %6 = vector.load %arg3[%c0_2, %c0_3, %c0_4] : memref<1x128x128xbf16, #tpu.memory_space<vmem>>, vector<1x128x128xbf16>
    %7 = vector.shape_cast %6 : vector<1x128x128xbf16> to vector<128x128xbf16>
    %cst = arith.constant dense<0.000000e+00> : vector<16x16x128xf32>
    %8 = tpu.matmul %5, %7, %cst {dimension_numbers = #tpu.dot_dimension_numbers<[2], [0], [0, 1], [1], [0, 0, 0, 1, 1, 1], [], []>} : vector<16x16x128xbf16>, vector<128x128xbf16>, vector<16x16x128xf32> -> vector<16x16x128xf32>
    %9 = vector.shape_cast %8 : vector<16x16x128xf32> to vector<1x16x16x128xf32>
    %10 = arith.truncf %9 : vector<1x16x16x128xf32> to vector<1x16x16x128xbf16>
    %c0_5 = arith.constant 0 : index
    %c0_6 = arith.constant 0 : index
    %c0_7 = arith.constant 0 : index
    %c0_8 = arith.constant 0 : index
    %11 = vector.load %arg4[%c0_5, %c0_6, %c0_7, %c0_8] : memref<1x16x16x128xbf16, #tpu.memory_space<vmem>>, vector<1x16x16x128xbf16>
    tpu.vector_store %arg4[%c0_5, %c0_6, %c0_7, %c0_8], %10 {strides = array<i32>} : memref<1x16x16x128xbf16, #tpu.memory_space<vmem>>, vector<1x16x16x128xbf16>,
    %cst_9 = arith.constant dense<0.000000e+00> : vector<128xf32>
    %12 = vector.multi_reduction <add>, %8, %cst_9 [0, 1] : vector<16x16x128xf32> to vector<128xf32>
    %cst_10 = arith.constant 2.560000e+02 : f32
    %13 = vector.broadcast %cst_10 : f32 to vector<128xf32>
    %14 = arith.divf %12, %13 : vector<128xf32>
    %15 = vector.shape_cast %14 : vector<128xf32> to vector<1x1x128xf32>
    %16 = vector.broadcast %15 : vector<1x1x128xf32> to vector<16x16x128xf32>
    %17 = arith.subf %8, %16 : vector<16x16x128xf32>
    %18 = arith.mulf %17, %17 : vector<16x16x128xf32>
    %cst_11 = arith.constant dense<0.000000e+00> : vector<128xf32>
    %19 = vector.multi_reduction <add>, %18, %cst_11 [0, 1] : vector<16x16x128xf32> to vector<128xf32>
    %20 = vector.shape_cast %12 : vector<128xf32> to vector<1x128xf32>
    %c0_12 = arith.constant 0 : index
    %c0_13 = arith.constant 0 : index
    %c0_14 = arith.constant 0 : index
    %c0_15 = arith.constant 0 : index
    %21 = vector.load %arg5[%c0_12, %c0_13, %c0_14, %c0_15] : memref<1x1x2x128xf32, #tpu.memory_space<vmem>>, vector<1x1x1x128xf32>
    %22 = vector.shape_cast %21 : vector<1x1x1x128xf32> to vector<1x128xf32>
    %23 = vector.shape_cast %20 : vector<1x128xf32> to vector<1x1x1x128xf32>
    tpu.vector_store %arg5[%c0_12, %c0_13, %c0_14, %c0_15], %23 {strides = array<i32>} : memref<1x1x2x128xf32, #tpu.memory_space<vmem>>, vector<1x1x1x128xf32>,
    %24 = vector.shape_cast %19 : vector<128xf32> to vector<1x128xf32>
    %c0_16 = arith.constant 0 : index
    %c0_17 = arith.constant 0 : index
    %c1 = arith.constant 1 : index
    %c0_18 = arith.constant 0 : index
    %25 = vector.load %arg5[%c0_16, %c0_17, %c1, %c0_18] : memref<1x1x2x128xf32, #tpu.memory_space<vmem>>, vector<1x1x1x128xf32>
    %26 = vector.shape_cast %25 : vector<1x1x1x128xf32> to vector<1x128xf32>
    %27 = vector.shape_cast %24 : vector<1x128xf32> to vector<1x1x1x128xf32>
    tpu.vector_store %arg5[%c0_16, %c0_17, %c1, %c0_18], %27 {strides = array<i32>} : memref<1x1x2x128xf32, #tpu.memory_space<vmem>>, vector<1x1x1x128xf32>,
    return
  }
  func.func @transform_0(%arg0: i32, %arg1: i32) -> (i32, i32, i32, i32) {
    %c0_i32 = arith.constant 0 : i32
    %c0_i32_0 = arith.constant 0 : i32
    %c0_i32_1 = arith.constant 0 : i32
    %c0_i32_2 = arith.constant 0 : i32
    return %arg0, %c0_i32, %c0_i32_0, %c0_i32_1 : i32, i32, i32, i32
  }
  func.func @transform_1(%arg0: i32, %arg1: i32) -> (i32, i32, i32) {
    %c0_i32 = arith.constant 0 : i32
    %c0_i32_0 = arith.constant 0 : i32
    %c0_i32_1 = arith.constant 0 : i32
    %c0_i32_2 = arith.constant 0 : i32
    return %c0_i32, %c0_i32_0, %c0_i32_1 : i32, i32, i32
  }
  func.func @transform_2(%arg0: i32, %arg1: i32) -> (i32, i32, i32, i32) {
    %c0_i32 = arith.constant 0 : i32
    %c0_i32_0 = arith.constant 0 : i32
    %c0_i32_1 = arith.constant 0 : i32
    return %arg0, %arg1, %c0_i32, %c0_i32_0 : i32, i32, i32, i32
  }
  func.func @transform_3(%arg0: i32, %arg1: i32) -> (i32, i32, i32, i32) {
    %c0_i32 = arith.constant 0 : i32
    %c0_i32_0 = arith.constant 0 : i32
    %c0_i32_1 = arith.constant 0 : i32
    return %arg0, %arg1, %c0_i32, %c0_i32_0 : i32, i32, i32, i32
  }
}

module attributes {stable_mosaic.version = 11 : i64} {
  func.func @_bn_relu_kernel(%arg0: i32, %arg1: i32, %arg2: memref<1x16x16x128xbf16, #tpu.memory_space<vmem>>, %arg3: memref<1x1x1x128xf32, #tpu.memory_space<vmem>>, %arg4: memref<1x1x1x128xf32, #tpu.memory_space<vmem>>, %arg5: memref<1x16x16x128xbf16, #tpu.memory_space<vmem>>) attributes {dimension_semantics = [#tpu.dimension_semantics<parallel>, #tpu.dimension_semantics<parallel>], iteration_bounds = array<i64: 2, 1>, scalar_prefetch = 0 : i64, scratch_operands = 0 : i64, tpu.core_type = #tpu.core_type<tc>, window_params = [{transform_indices = @transform_0, window_bounds = array<i64: 1, 16, 16, 128>}, {pipeline_mode = #tpu.pipeline_mode<synchronous>, transform_indices = @transform_1, window_bounds = array<i64: 1, 1, 1, 128>}, {pipeline_mode = #tpu.pipeline_mode<synchronous>, transform_indices = @transform_2, window_bounds = array<i64: 1, 1, 1, 128>}, {transform_indices = @transform_3, window_bounds = array<i64: 1, 16, 16, 128>}]} {
    %c0 = arith.constant 0 : index
    %c0_0 = arith.constant 0 : index
    %c0_1 = arith.constant 0 : index
    %c0_2 = arith.constant 0 : index
    %0 = vector.load %arg2[%c0, %c0_0, %c0_1, %c0_2] : memref<1x16x16x128xbf16, #tpu.memory_space<vmem>>, vector<1x16x16x128xbf16>
    %1 = arith.extf %0 : vector<1x16x16x128xbf16> to vector<1x16x16x128xf32>
    %c0_3 = arith.constant 0 : index
    %c0_4 = arith.constant 0 : index
    %c0_5 = arith.constant 0 : index
    %c0_6 = arith.constant 0 : index
    %2 = vector.load %arg3[%c0_3, %c0_4, %c0_5, %c0_6] : memref<1x1x1x128xf32, #tpu.memory_space<vmem>>, vector<1x1x1x128xf32>
    %3 = vector.broadcast %2 : vector<1x1x1x128xf32> to vector<1x16x16x128xf32>
    %4 = arith.mulf %1, %3 : vector<1x16x16x128xf32>
    %c0_7 = arith.constant 0 : index
    %c0_8 = arith.constant 0 : index
    %c0_9 = arith.constant 0 : index
    %c0_10 = arith.constant 0 : index
    %5 = vector.load %arg4[%c0_7, %c0_8, %c0_9, %c0_10] : memref<1x1x1x128xf32, #tpu.memory_space<vmem>>, vector<1x1x1x128xf32>
    %6 = vector.broadcast %5 : vector<1x1x1x128xf32> to vector<1x16x16x128xf32>
    %7 = arith.addf %4, %6 : vector<1x16x16x128xf32>
    %cst = arith.constant 0.000000e+00 : f32
    %8 = vector.broadcast %cst : f32 to vector<1x16x16x128xf32>
    %9 = arith.maximumf %7, %8 : vector<1x16x16x128xf32>
    %10 = arith.truncf %9 : vector<1x16x16x128xf32> to vector<1x16x16x128xbf16>
    %c0_11 = arith.constant 0 : index
    %c0_12 = arith.constant 0 : index
    %c0_13 = arith.constant 0 : index
    %c0_14 = arith.constant 0 : index
    %11 = vector.load %arg5[%c0_11, %c0_12, %c0_13, %c0_14] : memref<1x16x16x128xbf16, #tpu.memory_space<vmem>>, vector<1x16x16x128xbf16>
    tpu.vector_store %arg5[%c0_11, %c0_12, %c0_13, %c0_14], %10 {strides = array<i32>} : memref<1x16x16x128xbf16, #tpu.memory_space<vmem>>, vector<1x16x16x128xbf16>,
    return
  }
  func.func @transform_0(%arg0: i32, %arg1: i32) -> (i32, i32, i32, i32) {
    %c0_i32 = arith.constant 0 : i32
    %c0_i32_0 = arith.constant 0 : i32
    %c0_i32_1 = arith.constant 0 : i32
    return %arg0, %arg1, %c0_i32, %c0_i32_0 : i32, i32, i32, i32
  }
  func.func @transform_1(%arg0: i32, %arg1: i32) -> (i32, i32, i32, i32) {
    %c0_i32 = arith.constant 0 : i32
    %c0_i32_0 = arith.constant 0 : i32
    %c0_i32_1 = arith.constant 0 : i32
    %c0_i32_2 = arith.constant 0 : i32
    %c0_i32_3 = arith.constant 0 : i32
    return %c0_i32, %c0_i32_0, %c0_i32_1, %c0_i32_2 : i32, i32, i32, i32
  }
  func.func @transform_2(%arg0: i32, %arg1: i32) -> (i32, i32, i32, i32) {
    %c0_i32 = arith.constant 0 : i32
    %c0_i32_0 = arith.constant 0 : i32
    %c0_i32_1 = arith.constant 0 : i32
    %c0_i32_2 = arith.constant 0 : i32
    %c0_i32_3 = arith.constant 0 : i32
    return %c0_i32, %c0_i32_0, %c0_i32_1, %c0_i32_2 : i32, i32, i32, i32
  }
  func.func @transform_3(%arg0: i32, %arg1: i32) -> (i32, i32, i32, i32) {
    %c0_i32 = arith.constant 0 : i32
    %c0_i32_0 = arith.constant 0 : i32
    %c0_i32_1 = arith.constant 0 : i32
    return %arg0, %arg1, %c0_i32, %c0_i32_0 : i32, i32, i32, i32
  }
}

</mosaic_0001>

<llo_original>
// kernel: aspp_module_forward.3
$region0: #{aspp_module_forward.3}
  #allocation0 [shape = 'u32[]', space=smem, size = 0x4, offset = 0x4, fixed_abs, tag = 'smem constant byte address 0x4 - core index']
  #allocation1 [shape = 'u32[144,128]{1,0:T(1,128)}', space=vmem, size = 0x12000, scoped, tag = 'internal scratch']
  %s0 = inlined_call_operand.vmem [shape: bf16[2,16,16,128], index: 0, kind: input, shape index: {}, may-alias: {0,3}]
  %s1 = inlined_call_operand.vmem [shape: f32[1,1,1,128], index: 1, kind: input, shape index: {}]
  %s2 = inlined_call_operand.vmem [shape: f32[1,1,1,128], index: 2, kind: input, shape index: {}]
  %s3 = inlined_call_operand.vmem [shape: bf16[2,16,16,128], index: 3, kind: output, shape index: {}, may-alias: {0,3}]
  %s4 = sld [smem:[#allocation0]]
  $region45: #{aspp_module_forward.3} parent=0
    _
  %s6 = ssub.s32 1, %s4
  %s7 = scalar_select 0, %s6, %s4
  loop: start=0, step=1, limit=4
  $region2: #{aspp_module_forward.3} parent=0 // loop_pre_header
    _
  $region3: #{aspp_module_forward.3} parent=0 // loop_header
    %s9 = sphi 0, %s13
    %p10 = scmp.ge.s32.totalorder %s9, 4
    %s16 = sphi 0, %s28
    %s17 = sphi 0, %s24
    %s18 = sphi 0, %s16
    %s19 = sphi 0, %s17
    %s20 = sphi 0, %s18
    %s21 = sphi 0, %s19
    %s33 = sphi 0, %s35
    %s36 = sphi 0, %s33
    %s37 = sphi 0, %s36
    %s53 = sphi 0, %s37
    %s57 = sphi 0, %s57
    %s59 = sphi 0, %s57
    %s60 = sphi 0, %s59
    %s74 = sphi 0, %s60
    %s78 = sphi 0, %s78
    %s80 = sphi 0, %s78
    %s81 = sphi 0, %s80
    %s95 = sphi 0, %s81
    %s103 = sphi 0, %s105
    %s106 = sphi 0, %s103
    %s107 = sphi 0, %s106
    %s123 = sphi 0, %s107
  $region4: #{aspp_module_forward.3} parent=0 // loop_header_branch
    %12 = sbr.rel (%p10) target = $region8
  $region5: #{aspp_module_forward.3} parent=0 // loop_body
    %s14 = ssub.s32 %s9, 1
    %s15 = ssub.s32 %s9, 2
    %s22 = sadd.s32 1, %s17
    %p23 = scmp.ge.s32.totalorder %s22, 1
    %s24 = scalar_select %p23, 0, %s22
    %s25 = sadd.s32 1, %s16
    %s26 = scalar_select %p23, %s25, %s16
    %p27 = scmp.ge.s32.totalorder %s26, 2
    %s28 = scalar_select %p27, 0, %s26
    %s29 = ssub.s32 %s16, %s28
    %s30 = ssub.s32 %s17, %s24
    %s31 = sor.u32 %s29, %s30
    %p32 = scmp.eq.s32.totalorder %s31, 0
    %s34 = sadd.s32 %s33, 1
    %s35 = scalar_select %p32, %s33, %s34
    %p38 = pneg %p32
    %p39 = scmp.eq.s32.totalorder %s9, 1
    %p40 = por %p38, %p39
    %p41 = scmp.ne.s32.totalorder %s33, %s36
    %p42 = scmp.eq.s32.totalorder %s9, 0
    %p43 = por %p41, %p42
    %p44 = scmp.ne.s32.totalorder %s33, %s36
    %p45 = scmp.eq.s32.totalorder %s14, 1
    %p46 = por %p44, %p45
    %p47 = scmp.ne.s32.totalorder %s36, %s37
    %p48 = scmp.eq.s32.totalorder %s14, 0
    %p49 = por %p47, %p48
    %p50 = scmp.ne.s32.totalorder %s36, %s37
    %p51 = scmp.eq.s32.totalorder %s15, 1
    %p52 = por %p50, %p51
    %p54 = scmp.ne.s32.totalorder %s37, %s53
    %p55 = scmp.eq.s32.totalorder %s15, 0
    %p56 = por %p54, %p55
    %s58 = sadd.s32 %s57, 1
    %p61 = scmp.eq.s32.totalorder %s9, 1
    %p62 = scmp.ne.s32.totalorder %s57, %s59
    %p63 = scmp.eq.s32.totalorder %s9, 0
    %p64 = por %p62, %p63
    %p65 = scmp.ne.s32.totalorder %s57, %s59
    %p66 = scmp.eq.s32.totalorder %s14, 1
    %p67 = por %p65, %p66
    %p68 = scmp.ne.s32.totalorder %s59, %s60
    %p69 = scmp.eq.s32.totalorder %s14, 0
    %p70 = por %p68, %p69
    %p71 = scmp.ne.s32.totalorder %s59, %s60
    %p72 = scmp.eq.s32.totalorder %s15, 1
    %p73 = por %p71, %p72
    %p75 = scmp.ne.s32.totalorder %s60, %s74
    %p76 = scmp.eq.s32.totalorder %s15, 0
    %p77 = por %p75, %p76
    %s79 = sadd.s32 %s78, 1
    %p82 = scmp.eq.s32.totalorder %s9, 1
    %p83 = scmp.ne.s32.totalorder %s78, %s80
    %p84 = scmp.eq.s32.totalorder %s9, 0
    %p85 = por %p83, %p84
    %p86 = scmp.ne.s32.totalorder %s78, %s80
    %p87 = scmp.eq.s32.totalorder %s14, 1
    %p88 = por %p86, %p87
    %p89 = scmp.ne.s32.totalorder %s80, %s81
    %p90 = scmp.eq.s32.totalorder %s14, 0
    %p91 = por %p89, %p90
    %p92 = scmp.ne.s32.totalorder %s80, %s81
    %p93 = scmp.eq.s32.totalorder %s15, 1
    %p94 = por %p92, %p93
    %p96 = scmp.ne.s32.totalorder %s81, %s95
    %p97 = scmp.eq.s32.totalorder %s15, 0
    %p98 = por %p96, %p97
    %s99 = ssub.s32 %s16, %s28
    %s100 = ssub.s32 %s17, %s24
    %s101 = sor.u32 %s99, %s100
    %p102 = scmp.eq.s32.totalorder %s101, 0
    %s104 = sadd.s32 %s103, 1
    %s105 = scalar_select %p102, %s103, %s104
    %p108 = pneg %p102
    %p109 = scmp.eq.s32.totalorder %s9, 1
    %p110 = por %p108, %p109
    %p111 = scmp.ne.s32.totalorder %s103, %s106
    %p112 = scmp.eq.s32.totalorder %s9, 0
    %p113 = por %p111, %p112
    %p114 = scmp.ne.s32.totalorder %s103, %s106
    %p115 = scmp.eq.s32.totalorder %s14, 1
    %p116 = por %p114, %p115
    %p117 = scmp.ne.s32.totalorder %s106, %s107
    %p118 = scmp.eq.s32.totalorder %s14, 0
    %p119 = por %p117, %p118
    %p120 = scmp.ne.s32.totalorder %s106, %s107
    %p121 = scmp.eq.s32.totalorder %s15, 1
    %p122 = por %p120, %p121
    %p124 = scmp.ne.s32.totalorder %s107, %s123
    %p125 = scmp.eq.s32.totalorder %s15, 0
    %p126 = por %p124, %p125
    %p127 = scmp.le.s32.totalorder 1, %s9
    %p128 = scmp.lt.s32.totalorder %s9, 3
    %p129 = pnand %p127, %p128
    %p130 = pneg %p129
    // Predicated region
    $region9: #{aspp_module_forward.3} parent=5 // pred_check
      _
    $region10: #{aspp_module_forward.3} parent=5 // pred_check_branch
      %132 = sbr.rel (%p129) target = $region12
    $region11: #{aspp_module_forward.3} parent=5 // pred_region
      %s133 = ssub.s32 %s9, 1
      // Predicated region
      $region13: #{aspp_module_forward.3} parent=11 // pred_check
        %p134 = pneg %p70
      $region14: #{aspp_module_forward.3} parent=11 // pred_check_branch
        %136 = sbr.rel (%p134) target = $region16
      $region15: #{aspp_module_forward.3} parent=11 // pred_region
        _
      $region16: #{aspp_module_forward.3} parent=11 // pred_fallthru
        _
      // Predicated region
      $region17: #{aspp_module_forward.3} parent=11 // pred_check
        %p137 = pneg %p91
      $region18: #{aspp_module_forward.3} parent=11 // pred_check_branch
        %139 = sbr.rel (%p137) target = $region20
      $region19: #{aspp_module_forward.3} parent=11 // pred_region
        _
      $region20: #{aspp_module_forward.3} parent=11 // pred_fallthru
        _
    $region12: #{aspp_module_forward.3} parent=5 // pred_fallthru
      _
    %p140 = scmp.lt.s32.totalorder %s9, 2
    // Predicated region
    $region21: #{aspp_module_forward.3} parent=5 // pred_check
      %p141 = pneg %p140
    $region22: #{aspp_module_forward.3} parent=5 // pred_check_branch
      %143 = sbr.rel (%p141) target = $region24
    $region23: #{aspp_module_forward.3} parent=5 // pred_region
      // Predicated region
      $region25: #{aspp_module_forward.3} parent=23 // pred_check
        %p144 = pneg %p43
      $region26: #{aspp_module_forward.3} parent=23 // pred_check_branch
        %146 = sbr.rel (%p144) target = $region28
      $region27: #{aspp_module_forward.3} parent=23 // pred_region
        %s147 = smul.u32 16, %s17
        %p148 = scmp.lt.s32.totalorder %s16, 1
        %s149 = scalar_select %p148, %s16, 1
        %p150 = scmp.lt.s32.totalorder %s147, 15
        %s151 = scalar_select %p150, %s147, 15
        %s152 = smul.addr %s151, 2
        %s153 = smul.addr %s149, 32
        %s154 = sadd.s32 %s152, %s153
        %s155 = smul.addr %s154, 4
        %s156 = scalar_lea.vmem %s0, %s155
        %s157 = smul.u32 16, %s17
      $region28: #{aspp_module_forward.3} parent=23 // pred_fallthru
        _
    $region24: #{aspp_module_forward.3} parent=5 // pred_fallthru
      _
    %p158 = scmp.le.s32.totalorder 1, %s9
    %p159 = scmp.lt.s32.totalorder %s9, 3
    %p160 = pnand %p158, %p159
    %p161 = pneg %p160
    // Predicated region
    $region29: #{aspp_module_forward.3} parent=5 // pred_check
      _
    $region30: #{aspp_module_forward.3} parent=5 // pred_check_branch
      %163 = sbr.rel (%p160) target = $region32
    $region31: #{aspp_module_forward.3} parent=5 // pred_region
      %s164 = ssub.s32 %s9, 1
      %s165 = smul.u32 16, %s19
      %p166 = scmp.lt.s32.totalorder %s18, 1
      %s167 = scalar_select %p166, %s18, 1
      %p168 = scmp.lt.s32.totalorder %s165, 15
      %s169 = scalar_select %p168, %s165, 15
      %s170 = smul.addr %s169, 2
      %s171 = smul.addr %s167, 32
      %s172 = sadd.s32 %s170, %s171
      %s173 = smul.addr %s172, 4
      %s174 = scalar_lea.vmem %s0, %s173
      %p175 = pneg %p49
      %p176 = pneg %p46
      %p177 = pneg %p70
      %p178 = pneg %p67
      %p179 = pneg %p91
      %p180 = pneg %p88
      %p181 = pneg %p119
      %p182 = pneg %p116
      %s183 = smul.u32 16, %s19
      %p184 = scmp.lt.s32.totalorder %s18, 1
      %s185 = scalar_select %p184, %s18, 1
      %p186 = scmp.lt.s32.totalorder %s183, 15
      %s187 = scalar_select %p186, %s183, 15
      %s188 = smul.addr %s187, 2
      %s189 = smul.addr %s185, 32
      %s190 = sadd.s32 %s188, %s189
      %s191 = smul.addr %s190, 4
      %s192 = scalar_lea.vmem %s3, %s191
      %s193 = smul.u32 16, %s19
      %p194 = scmp.lt.s32.totalorder %s18, 1
      %s195 = scalar_select %p194, %s18, 1
      %p196 = scmp.lt.s32.totalorder %s193, 15
      %s197 = scalar_select %p196, %s193, 15
      %s198 = smul.addr %s197, 2
      %s199 = smul.addr %s195, 32
      %s200 = sadd.s32 %s198, %s199
      %s201 = smul.addr %s200, 4
      %s202 = scalar_lea.vmem %s0, %s201
      %s203 = smul.u32 16, %s19
      %s204 = smul.u32 16, %s19
      %p205 = scmp.lt.s32.totalorder %s18, 1
      %s206 = scalar_select %p205, %s18, 1
      %p207 = scmp.lt.s32.totalorder %s204, 15
      %s208 = scalar_select %p207, %s204, 15
      %s209 = smul.addr %s208, 2
      %s210 = smul.addr %s206, 32
      %s211 = sadd.s32 %s209, %s210
      %s212 = smul.addr %s211, 4
      %s213 = scalar_lea.vmem %s3, %s212
      %s214 = smul.u32 16, %s19
      %v215 = vld [vmem:[%s202] sm:$0xf]
      %v216 = vld [vmem:[%s202 + $0x4] sm:$0xf]
      %v217 = vld [vmem:[%s202 + $0x8] sm:$0xf]
      %v218 = vld [vmem:[%s202 + $0xc] sm:$0xf]
      %v219 = vld [vmem:[%s202 + $0x10] sm:$0xf]
      %v220 = vld [vmem:[%s202 + $0x14] sm:$0xf]
      %v221 = vld [vmem:[%s202 + $0x18] sm:$0xf]
      %v222 = vld [vmem:[%s202 + $0x1c] sm:$0xf]
      %v223 = vld [vmem:[%s202 + $0x20] sm:$0xf]
      %v224 = vld [vmem:[%s202 + $0x24] sm:$0xf]
      %v225 = vld [vmem:[%s202 + $0x28] sm:$0xf]
      %v226 = vld [vmem:[%s202 + $0x2c] sm:$0xf]
      %v227 = vld [vmem:[%s202 + $0x30] sm:$0xf]
      %v228 = vld [vmem:[%s202 + $0x34] sm:$0xf]
      %v229 = vld [vmem:[%s202 + $0x38] sm:$0xf]
      %v230 = vld [vmem:[%s202 + $0x3c] sm:$0xf]
      %v231 = vld [vmem:[%s202 + $0x40] sm:$0xf]
      %v232 = vld [vmem:[%s202 + $0x44] sm:$0xf]
      %v233 = vld [vmem:[%s202 + $0x48] sm:$0xf]
      %v234 = vld [vmem:[%s202 + $0x4c] sm:$0xf]
      %v235 = vld [vmem:[%s202 + $0x50] sm:$0xf]
      %v236 = vld [vmem:[%s202 + $0x54] sm:$0xf]
      %v237 = vld [vmem:[%s202 + $0x58] sm:$0xf]
      %v238 = vld [vmem:[%s202 + $0x5c] sm:$0xf]
      %v239 = vld [vmem:[%s202 + $0x60] sm:$0xf]
      %v240 = vld [vmem:[%s202 + $0x64] sm:$0xf]
      %v241 = vld [vmem:[%s202 + $0x68] sm:$0xf]
      %v242 = vld [vmem:[%s202 + $0x6c] sm:$0xf]
      %v243 = vld [vmem:[%s202 + $0x70] sm:$0xf]
      %v244 = vld [vmem:[%s202 + $0x74] sm:$0xf]
      %v245 = vld [vmem:[%s202 + $0x78] sm:$0xf]
      %v246 = vld [vmem:[%s202 + $0x7c] sm:$0xf]
      %v247 = vunpack.c.l.bf16 %v215
      %v248 = vunpack.c.l.bf16 %v216
      %v249 = vunpack.c.l.bf16 %v217
      %v250 = vunpack.c.l.bf16 %v218
      %v251 = vunpack.c.l.bf16 %v219
      %v252 = vunpack.c.l.bf16 %v220
      %v253 = vunpack.c.l.bf16 %v221
      %v254 = vunpack.c.l.bf16 %v222
      %v255 = vunpack.c.l.bf16 %v223
      %v256 = vunpack.c.l.bf16 %v224
      %v257 = vunpack.c.l.bf16 %v225
      %v258 = vunpack.c.l.bf16 %v226
      %v259 = vunpack.c.l.bf16 %v227
      %v260 = vunpack.c.l.bf16 %v228
      %v261 = vunpack.c.l.bf16 %v229
      %v262 = vunpack.c.l.bf16 %v230
      %v263 = vunpack.c.l.bf16 %v231
      %v264 = vunpack.c.l.bf16 %v232
      %v265 = vunpack.c.l.bf16 %v233
      %v266 = vunpack.c.l.bf16 %v234
      %v267 = vunpack.c.l.bf16 %v235
      %v268 = vunpack.c.l.bf16 %v236
      %v269 = vunpack.c.l.bf16 %v237
      %v270 = vunpack.c.l.bf16 %v238
      %v271 = vunpack.c.l.bf16 %v239
      %v272 = vunpack.c.l.bf16 %v240
      %v273 = vunpack.c.l.bf16 %v241
      %v274 = vunpack.c.l.bf16 %v242
      %v275 = vunpack.c.l.bf16 %v243
      %v276 = vunpack.c.l.bf16 %v244
      %v277 = vunpack.c.l.bf16 %v245
      %v278 = vunpack.c.l.bf16 %v246
      %v279 = vld [vmem:[%s1] sm:$0x1]
      %v281 = vlaneseq
      %v282 = vshrl.u32 %v281, 7
      %v283 = vsub.s32 0, %v282
      %v284 = vrot.slane %v279, %v283
      %v286 = vmul.f32 %v247, %v284
      %v287 = vmul.f32 %v248, %v284
      %v288 = vmul.f32 %v249, %v284
      %v289 = vmul.f32 %v250, %v284
      %v290 = vmul.f32 %v251, %v284
      %v291 = vmul.f32 %v252, %v284
      %v292 = vmul.f32 %v253, %v284
      %v293 = vmul.f32 %v254, %v284
      %v294 = vmul.f32 %v255, %v284
      %v295 = vmul.f32 %v256, %v284
      %v296 = vmul.f32 %v257, %v284
      %v297 = vmul.f32 %v258, %v284
      %v298 = vmul.f32 %v259, %v284
      %v299 = vmul.f32 %v260, %v284
      %v300 = vmul.f32 %v261, %v284
      %v301 = vmul.f32 %v262, %v284
      %v302 = vmul.f32 %v263, %v284
      %v303 = vmul.f32 %v264, %v284
      %v304 = vmul.f32 %v265, %v284
      %v305 = vmul.f32 %v266, %v284
      %v306 = vmul.f32 %v267, %v284
      %v307 = vmul.f32 %v268, %v284
      %v308 = vmul.f32 %v269, %v284
      %v309 = vmul.f32 %v270, %v284
      %v310 = vmul.f32 %v271, %v284
      %v311 = vmul.f32 %v272, %v284
      %v312 = vmul.f32 %v273, %v284
      %v313 = vmul.f32 %v274, %v284
      %v314 = vmul.f32 %v275, %v284
      %v315 = vmul.f32 %v276, %v284
      %v316 = vmul.f32 %v277, %v284
      %v317 = vmul.f32 %v278, %v284
      %v318 = vld [vmem:[%s2] sm:$0x1]
      %v320 = vlaneseq
      %v321 = vshrl.u32 %v320, 7
      %v322 = vsub.s32 0, %v321
      %v323 = vrot.slane %v318, %v322
      %v325 = vadd.f32 %v286, %v323
      %v326 = vadd.f32 %v287, %v323
      %v327 = vadd.f32 %v288, %v323
      %v328 = vadd.f32 %v289, %v323
      %v329 = vadd.f32 %v290, %v323
      %v330 = vadd.f32 %v291, %v323
      %v331 = vadd.f32 %v292, %v323
      %v332 = vadd.f32 %v293, %v323
      %v333 = vadd.f32 %v294, %v323
      %v334 = vadd.f32 %v295, %v323
      %v335 = vadd.f32 %v296, %v323
      %v336 = vadd.f32 %v297, %v323
      %v337 = vadd.f32 %v298, %v323
      %v338 = vadd.f32 %v299, %v323
      %v339 = vadd.f32 %v300, %v323
      %v340 = vadd.f32 %v301, %v323
      %v341 = vadd.f32 %v302, %v323
      %v342 = vadd.f32 %v303, %v323
      %v343 = vadd.f32 %v304, %v323
      %v344 = vadd.f32 %v305, %v323
      %v345 = vadd.f32 %v306, %v323
      %v346 = vadd.f32 %v307, %v323
      %v347 = vadd.f32 %v308, %v323
      %v348 = vadd.f32 %v309, %v323
      %v349 = vadd.f32 %v310, %v323
      %v350 = vadd.f32 %v311, %v323
      %v351 = vadd.f32 %v312, %v323
      %v352 = vadd.f32 %v313, %v323
      %v353 = vadd.f32 %v314, %v323
      %v354 = vadd.f32 %v315, %v323
      %v355 = vadd.f32 %v316, %v323
      %v356 = vadd.f32 %v317, %v323
      %v357 = vmax.f32 %v325, 0.0
      %v358 = vmax.f32 %v326, 0.0
      %v359 = vmax.f32 %v327, 0.0
      %v360 = vmax.f32 %v328, 0.0
      %v361 = vmax.f32 %v329, 0.0
      %v362 = vmax.f32 %v330, 0.0
      %v363 = vmax.f32 %v331, 0.0
      %v364 = vmax.f32 %v332, 0.0
      %v365 = vmax.f32 %v333, 0.0
      %v366 = vmax.f32 %v334, 0.0
      %v367 = vmax.f32 %v335, 0.0
      %v368 = vmax.f32 %v336, 0.0
      %v369 = vmax.f32 %v337, 0.0
      %v370 = vmax.f32 %v338, 0.0
      %v371 = vmax.f32 %v339, 0.0
      %v372 = vmax.f32 %v340, 0.0
      %v373 = vmax.f32 %v341, 0.0
      %v374 = vmax.f32 %v342, 0.0
      %v375 = vmax.f32 %v343, 0.0
      %v376 = vmax.f32 %v344, 0.0
      %v377 = vmax.f32 %v345, 0.0
      %v378 = vmax.f32 %v346, 0.0
      %v379 = vmax.f32 %v347, 0.0
      %v380 = vmax.f32 %v348, 0.0
      %v381 = vmax.f32 %v349, 0.0
      %v382 = vmax.f32 %v350, 0.0
      %v383 = vmax.f32 %v351, 0.0
      %v384 = vmax.f32 %v352, 0.0
      %v385 = vmax.f32 %v353, 0.0
      %v386 = vmax.f32 %v354, 0.0
      %v387 = vmax.f32 %v355, 0.0
      %v388 = vmax.f32 %v356, 0.0
      %v389 = vpack.c.bf16 %v358, %v357
      %v390 = vpack.c.bf16 %v360, %v359
      %v391 = vpack.c.bf16 %v362, %v361
      %v392 = vpack.c.bf16 %v364, %v363
      %v393 = vpack.c.bf16 %v366, %v365
      %v394 = vpack.c.bf16 %v368, %v367
      %v395 = vpack.c.bf16 %v370, %v369
      %v396 = vpack.c.bf16 %v372, %v371
      %v397 = vpack.c.bf16 %v374, %v373
      %v398 = vpack.c.bf16 %v376, %v375
      %v399 = vpack.c.bf16 %v378, %v377
      %v400 = vpack.c.bf16 %v380, %v379
      %v401 = vpack.c.bf16 %v382, %v381
      %v402 = vpack.c.bf16 %v384, %v383
      %v403 = vpack.c.bf16 %v386, %v385
      %v404 = vpack.c.bf16 %v388, %v387
      %v421 = vunpack.c.l.b16 %v389
      %v422 = vunpack.c.h.b16 %v389
      %v423 = vunpack.c.l.b16 %v390
      %v424 = vunpack.c.h.b16 %v390
      %v425 = vunpack.c.l.b16 %v391
      %v426 = vunpack.c.h.b16 %v391
      %v427 = vunpack.c.l.b16 %v392
      %v428 = vunpack.c.h.b16 %v392
      %v429 = vunpack.c.l.b16 %v393
      %v430 = vunpack.c.h.b16 %v393
      %v431 = vunpack.c.l.b16 %v394
      %v432 = vunpack.c.h.b16 %v394
      %v433 = vunpack.c.l.b16 %v395
      %v434 = vunpack.c.h.b16 %v395
      %v435 = vunpack.c.l.b16 %v396
      %v436 = vunpack.c.h.b16 %v396
      %v437 = vunpack.c.l.b16 %v397
      %v438 = vunpack.c.h.b16 %v397
      %v439 = vunpack.c.l.b16 %v398
      %v440 = vunpack.c.h.b16 %v398
      %v441 = vunpack.c.l.b16 %v399
      %v442 = vunpack.c.h.b16 %v399
      %v443 = vunpack.c.l.b16 %v400
      %v444 = vunpack.c.h.b16 %v400
      %v445 = vunpack.c.l.b16 %v401
      %v446 = vunpack.c.h.b16 %v401
      %v447 = vunpack.c.l.b16 %v402
      %v448 = vunpack.c.h.b16 %v402
      %v449 = vunpack.c.l.b16 %v403
      %v450 = vunpack.c.h.b16 %v403
      %v451 = vunpack.c.l.b16 %v404
      %v452 = vunpack.c.h.b16 %v404
      %v453 = vpack.c.b16 %v421, %v421
      %v454 = vpack.c.b16 %v422, %v422
      %v455 = vpack.c.b16 %v423, %v423
      %v456 = vpack.c.b16 %v424, %v424
      %v457 = vpack.c.b16 %v425, %v425
      %v458 = vpack.c.b16 %v426, %v426
      %v459 = vpack.c.b16 %v427, %v427
      %v460 = vpack.c.b16 %v428, %v428
      %v461 = vpack.c.b16 %v429, %v429
      %v462 = vpack.c.b16 %v430, %v430
      %v463 = vpack.c.b16 %v431, %v431
      %v464 = vpack.c.b16 %v432, %v432
      %v465 = vpack.c.b16 %v433, %v433
      %v466 = vpack.c.b16 %v434, %v434
      %v467 = vpack.c.b16 %v435, %v435
      %v468 = vpack.c.b16 %v436, %v436
      %v469 = vpack.c.b16 %v437, %v437
      %v470 = vpack.c.b16 %v438, %v438
      %v471 = vpack.c.b16 %v439, %v439
      %v472 = vpack.c.b16 %v440, %v440
      %v473 = vpack.c.b16 %v441, %v441
      %v474 = vpack.c.b16 %v442, %v442
      %v475 = vpack.c.b16 %v443, %v443
      %v476 = vpack.c.b16 %v444, %v444
      %v477 = vpack.c.b16 %v445, %v445
      %v478 = vpack.c.b16 %v446, %v446
      %v479 = vpack.c.b16 %v447, %v447
      %v480 = vpack.c.b16 %v448, %v448
      %v481 = vpack.c.b16 %v449, %v449
      %v482 = vpack.c.b16 %v450, %v450
      %v483 = vpack.c.b16 %v451, %v451
      %v484 = vpack.c.b16 %v452, %v452
      %517 = vst [vmem:[%s213] sm:$0xf] %v453
      %518 = vst [vmem:[%s213 + $0x4] sm:$0xf] %v454
      %519 = vst [vmem:[%s213 + $0x8] sm:$0xf] %v455
      %520 = vst [vmem:[%s213 + $0xc] sm:$0xf] %v456
      %521 = vst [vmem:[%s213 + $0x10] sm:$0xf] %v457
      %522 = vst [vmem:[%s213 + $0x14] sm:$0xf] %v458
      %523 = vst [vmem:[%s213 + $0x18] sm:$0xf] %v459
      %524 = vst [vmem:[%s213 + $0x1c] sm:$0xf] %v460
      %525 = vst [vmem:[%s213 + $0x20] sm:$0xf] %v461
      %526 = vst [vmem:[%s213 + $0x24] sm:$0xf] %v462
      %527 = vst [vmem:[%s213 + $0x28] sm:$0xf] %v463
      %528 = vst [vmem:[%s213 + $0x2c] sm:$0xf] %v464
      %529 = vst [vmem:[%s213 + $0x30] sm:$0xf] %v465
      %530 = vst [vmem:[%s213 + $0x34] sm:$0xf] %v466
      %531 = vst [vmem:[%s213 + $0x38] sm:$0xf] %v467
      %532 = vst [vmem:[%s213 + $0x3c] sm:$0xf] %v468
      %533 = vst [vmem:[%s213 + $0x40] sm:$0xf] %v469
      %534 = vst [vmem:[%s213 + $0x44] sm:$0xf] %v470
      %535 = vst [vmem:[%s213 + $0x48] sm:$0xf] %v471
      %536 = vst [vmem:[%s213 + $0x4c] sm:$0xf] %v472
      %537 = vst [vmem:[%s213 + $0x50] sm:$0xf] %v473
      %538 = vst [vmem:[%s213 + $0x54] sm:$0xf] %v474
      %539 = vst [vmem:[%s213 + $0x58] sm:$0xf] %v475
      %540 = vst [vmem:[%s213 + $0x5c] sm:$0xf] %v476
      %541 = vst [vmem:[%s213 + $0x60] sm:$0xf] %v477
      %542 = vst [vmem:[%s213 + $0x64] sm:$0xf] %v478
      %543 = vst [vmem:[%s213 + $0x68] sm:$0xf] %v479
      %544 = vst [vmem:[%s213 + $0x6c] sm:$0xf] %v480
      %545 = vst [vmem:[%s213 + $0x70] sm:$0xf] %v481
      %546 = vst [vmem:[%s213 + $0x74] sm:$0xf] %v482
      %547 = vst [vmem:[%s213 + $0x78] sm:$0xf] %v483
      %548 = vst [vmem:[%s213 + $0x7c] sm:$0xf] %v484
      %s549 = smul.u32 16, %s19
      %p550 = scmp.lt.s32.totalorder %s18, 1
      %s551 = scalar_select %p550, %s18, 1
      %p552 = scmp.lt.s32.totalorder %s549, 15
      %s553 = scalar_select %p552, %s549, 15
      %s554 = smul.addr %s553, 2
      %s555 = smul.addr %s551, 32
      %s556 = sadd.s32 %s554, %s555
      %s557 = smul.addr %s556, 4
      %s558 = scalar_lea.vmem %s3, %s557
      // Predicated region
      $region33: #{aspp_module_forward.3} parent=31 // pred_check
        %p559 = pneg %p116
      $region34: #{aspp_module_forward.3} parent=31 // pred_check_branch
        %561 = sbr.rel (%p559) target = $region36
      $region35: #{aspp_module_forward.3} parent=31 // pred_region
        %s562 = smul.u32 16, %s19
      $region36: #{aspp_module_forward.3} parent=31 // pred_fallthru
        _
    $region32: #{aspp_module_forward.3} parent=5 // pred_fallthru
      _
    %p563 = scmp.le.s32.totalorder 2, %s9
    // Predicated region
    $region37: #{aspp_module_forward.3} parent=5 // pred_check
      %p564 = pneg %p563
    $region38: #{aspp_module_forward.3} parent=5 // pred_check_branch
      %566 = sbr.rel (%p564) target = $region40
    $region39: #{aspp_module_forward.3} parent=5 // pred_region
      %s567 = ssub.s32 %s9, 2
      // Predicated region
      $region41: #{aspp_module_forward.3} parent=39 // pred_check
        %p568 = pneg %p122
      $region42: #{aspp_module_forward.3} parent=39 // pred_check_branch
        %570 = sbr.rel (%p568) target = $region44
      $region43: #{aspp_module_forward.3} parent=39 // pred_region
        %s571 = smul.u32 16, %s21
        %p572 = scmp.lt.s32.totalorder %s20, 1
        %s573 = scalar_select %p572, %s20, 1
        %p574 = scmp.lt.s32.totalorder %s571, 15
        %s575 = scalar_select %p574, %s571, 15
        %s576 = smul.addr %s575, 2
        %s577 = smul.addr %s573, 32
        %s578 = sadd.s32 %s576, %s577
        %s579 = smul.addr %s578, 4
        %s580 = scalar_lea.vmem %s3, %s579
      $region44: #{aspp_module_forward.3} parent=39 // pred_fallthru
        _
    $region40: #{aspp_module_forward.3} parent=5 // pred_fallthru
      _
  $region6: #{aspp_module_forward.3} parent=0 // loop_footer
    %s13 = sadd.s32 1, %s9
  $region7: #{aspp_module_forward.3} parent=0 // loop_footer_branch
    %8 = sbr.rel target = $region3
  $region8: #{aspp_module_forward.3} parent=0 // loop_exit
    _

// kernel: aspp_module_forward.2
$region0: #{aspp_module_forward.2}
  #allocation0 [shape = 'u32[]', space=smem, size = 0x4, offset = 0x4, fixed_abs, tag = 'smem constant byte address 0x4 - core index']
  #allocation1 [shape = 'u32[144,128]{1,0:T(1,128)}', space=vmem, size = 0x12000, scoped, tag = 'internal scratch']
  %s0 = inlined_call_operand.vmem [shape: bf16[2,16,16,128], index: 0, kind: input, shape index: {}]
  %s1 = inlined_call_operand.vmem [shape: bf16[1,128,128], index: 1, kind: input, shape index: {}]
  %s2 = inlined_call_operand.vmem [shape: bf16[2,16,16,128], index: 2, kind: output, shape index: {0}]
  %s3 = inlined_call_operand.vmem [shape: f32[2,1,2,128], index: 3, kind: output, shape index: {1}]
  %4 = xla_tuple %s2, %s3
  %s5 = sld [smem:[#allocation0]]
  $region49: #{aspp_module_forward.2} parent=0
    _
  %s7 = ssub.s32 1, %s5
  %s8 = scalar_select 0, %s7, %s5
  loop: start=0, step=1, limit=4
  $region2: #{aspp_module_forward.2} parent=0 // loop_pre_header
    _
  $region3: #{aspp_module_forward.2} parent=0 // loop_header
    %s10 = sphi 0, %s14
    %p11 = scmp.ge.s32.totalorder %s10, 4
    %s17 = sphi 0, %s29
    %s18 = sphi 0, %s25
    %s19 = sphi 0, %s17
    %s20 = sphi 0, %s18
    %s21 = sphi 0, %s19
    %s22 = sphi 0, %s20
    %s32 = sphi 0, %s34
    %s35 = sphi 0, %s32
    %s36 = sphi 0, %s35
    %s52 = sphi 0, %s36
    %s56 = sphi 0, %s56
    %s58 = sphi 0, %s56
    %s59 = sphi 0, %s58
    %s73 = sphi 0, %s59
    %s81 = sphi 0, %s83
    %s84 = sphi 0, %s81
    %s85 = sphi 0, %s84
    %s101 = sphi 0, %s85
    %s109 = sphi 0, %s111
    %s112 = sphi 0, %s109
    %s113 = sphi 0, %s112
    %s129 = sphi 0, %s113
  $region4: #{aspp_module_forward.2} parent=0 // loop_header_branch
    %13 = sbr.rel (%p11) target = $region8
  $region5: #{aspp_module_forward.2} parent=0 // loop_body
    %s15 = ssub.s32 %s10, 1
    %s16 = ssub.s32 %s10, 2
    %s23 = sadd.s32 1, %s18
    %p24 = scmp.ge.s32.totalorder %s23, 1
    %s25 = scalar_select %p24, 0, %s23
    %s26 = sadd.s32 1, %s17
    %s27 = scalar_select %p24, %s26, %s17
    %p28 = scmp.ge.s32.totalorder %s27, 2
    %s29 = scalar_select %p28, 0, %s27
    %s30 = ssub.s32 %s17, %s29
    %p31 = scmp.eq.s32.totalorder %s30, 0
    %s33 = sadd.s32 %s32, 1
    %s34 = scalar_select %p31, %s32, %s33
    %p37 = pneg %p31
    %p38 = scmp.eq.s32.totalorder %s10, 1
    %p39 = por %p37, %p38
    %p40 = scmp.ne.s32.totalorder %s32, %s35
    %p41 = scmp.eq.s32.totalorder %s10, 0
    %p42 = por %p40, %p41
    %p43 = scmp.ne.s32.totalorder %s32, %s35
    %p44 = scmp.eq.s32.totalorder %s15, 1
    %p45 = por %p43, %p44
    %p46 = scmp.ne.s32.totalorder %s35, %s36
    %p47 = scmp.eq.s32.totalorder %s15, 0
    %p48 = por %p46, %p47
    %p49 = scmp.ne.s32.totalorder %s35, %s36
    %p50 = scmp.eq.s32.totalorder %s16, 1
    %p51 = por %p49, %p50
    %p53 = scmp.ne.s32.totalorder %s36, %s52
    %p54 = scmp.eq.s32.totalorder %s16, 0
    %p55 = por %p53, %p54
    %s57 = sadd.s32 %s56, 1
    %p60 = scmp.eq.s32.totalorder %s10, 1
    %p61 = scmp.ne.s32.totalorder %s56, %s58
    %p62 = scmp.eq.s32.totalorder %s10, 0
    %p63 = por %p61, %p62
    %p64 = scmp.ne.s32.totalorder %s56, %s58
    %p65 = scmp.eq.s32.totalorder %s15, 1
    %p66 = por %p64, %p65
    %p67 = scmp.ne.s32.totalorder %s58, %s59
    %p68 = scmp.eq.s32.totalorder %s15, 0
    %p69 = por %p67, %p68
    %p70 = scmp.ne.s32.totalorder %s58, %s59
    %p71 = scmp.eq.s32.totalorder %s16, 1
    %p72 = por %p70, %p71
    %p74 = scmp.ne.s32.totalorder %s59, %s73
    %p75 = scmp.eq.s32.totalorder %s16, 0
    %p76 = por %p74, %p75
    %s77 = ssub.s32 %s17, %s29
    %s78 = ssub.s32 %s18, %s25
    %s79 = sor.u32 %s77, %s78
    %p80 = scmp.eq.s32.totalorder %s79, 0
    %s82 = sadd.s32 %s81, 1
    %s83 = scalar_select %p80, %s81, %s82
    %p86 = pneg %p80
    %p87 = scmp.eq.s32.totalorder %s10, 1
    %p88 = por %p86, %p87
    %p89 = scmp.ne.s32.totalorder %s81, %s84
    %p90 = scmp.eq.s32.totalorder %s10, 0
    %p91 = por %p89, %p90
    %p92 = scmp.ne.s32.totalorder %s81, %s84
    %p93 = scmp.eq.s32.totalorder %s15, 1
    %p94 = por %p92, %p93
    %p95 = scmp.ne.s32.totalorder %s84, %s85
    %p96 = scmp.eq.s32.totalorder %s15, 0
    %p97 = por %p95, %p96
    %p98 = scmp.ne.s32.totalorder %s84, %s85
    %p99 = scmp.eq.s32.totalorder %s16, 1
    %p100 = por %p98, %p99
    %p102 = scmp.ne.s32.totalorder %s85, %s101
    %p103 = scmp.eq.s32.totalorder %s16, 0
    %p104 = por %p102, %p103
    %s105 = ssub.s32 %s17, %s29
    %s106 = ssub.s32 %s18, %s25
    %s107 = sor.u32 %s105, %s106
    %p108 = scmp.eq.s32.totalorder %s107, 0
    %s110 = sadd.s32 %s109, 1
    %s111 = scalar_select %p108, %s109, %s110
    %p114 = pneg %p108
    %p115 = scmp.eq.s32.totalorder %s10, 1
    %p116 = por %p114, %p115
    %p117 = scmp.ne.s32.totalorder %s109, %s112
    %p118 = scmp.eq.s32.totalorder %s10, 0
    %p119 = por %p117, %p118
    %p120 = scmp.ne.s32.totalorder %s109, %s112
    %p121 = scmp.eq.s32.totalorder %s15, 1
    %p122 = por %p120, %p121
    %p123 = scmp.ne.s32.totalorder %s112, %s113
    %p124 = scmp.eq.s32.totalorder %s15, 0
    %p125 = por %p123, %p124
    %p126 = scmp.ne.s32.totalorder %s112, %s113
    %p127 = scmp.eq.s32.totalorder %s16, 1
    %p128 = por %p126, %p127
    %p130 = scmp.ne.s32.totalorder %s113, %s129
    %p131 = scmp.eq.s32.totalorder %s16, 0
    %p132 = por %p130, %p131
    %p133 = scmp.le.s32.totalorder 1, %s10
    %p134 = scmp.lt.s32.totalorder %s10, 3
    %p135 = pnand %p133, %p134
    %p136 = pneg %p135
    // Predicated region
    $region9: #{aspp_module_forward.2} parent=5 // pred_check
      _
    $region10: #{aspp_module_forward.2} parent=5 // pred_check_branch
      %138 = sbr.rel (%p135) target = $region12
    $region11: #{aspp_module_forward.2} parent=5 // pred_region
      %s139 = ssub.s32 %s10, 1
      // Predicated region
      $region13: #{aspp_module_forward.2} parent=11 // pred_check
        %p140 = pneg %p69
      $region14: #{aspp_module_forward.2} parent=11 // pred_check_branch
        %142 = sbr.rel (%p140) target = $region16
      $region15: #{aspp_module_forward.2} parent=11 // pred_region
        _
      $region16: #{aspp_module_forward.2} parent=11 // pred_fallthru
        _
    $region12: #{aspp_module_forward.2} parent=5 // pred_fallthru
      _
    %p143 = scmp.lt.s32.totalorder %s10, 2
    // Predicated region
    $region17: #{aspp_module_forward.2} parent=5 // pred_check
      %p144 = pneg %p143
    $region18: #{aspp_module_forward.2} parent=5 // pred_check_branch
      %146 = sbr.rel (%p144) target = $region20
    $region19: #{aspp_module_forward.2} parent=5 // pred_region
      // Predicated region
      $region21: #{aspp_module_forward.2} parent=19 // pred_check
        %p147 = pneg %p42
      $region22: #{aspp_module_forward.2} parent=19 // pred_check_branch
        %149 = sbr.rel (%p147) target = $region24
      $region23: #{aspp_module_forward.2} parent=19 // pred_region
        %p150 = scmp.lt.s32.totalorder %s17, 1
        %s151 = scalar_select %p150, %s17, 1
        %s152 = smul.addr %s151, 32
        %s153 = smul.addr %s152, 4
        %s154 = scalar_lea.vmem %s0, %s153
      $region24: #{aspp_module_forward.2} parent=19 // pred_fallthru
        _
    $region20: #{aspp_module_forward.2} parent=5 // pred_fallthru
      _
    %p155 = scmp.le.s32.totalorder 1, %s10
    %p156 = scmp.lt.s32.totalorder %s10, 3
    %p157 = pnand %p155, %p156
    %p158 = pneg %p157
    // Predicated region
    $region25: #{aspp_module_forward.2} parent=5 // pred_check
      _
    $region26: #{aspp_module_forward.2} parent=5 // pred_check_branch
      %160 = sbr.rel (%p157) target = $region28
    $region27: #{aspp_module_forward.2} parent=5 // pred_region
      %s161 = ssub.s32 %s10, 1
      %p162 = scmp.lt.s32.totalorder %s19, 1
      %s163 = scalar_select %p162, %s19, 1
      %s164 = smul.addr %s163, 32
      %s165 = smul.addr %s164, 4
      %s166 = scalar_lea.vmem %s0, %s165
      %p167 = pneg %p48
      %p168 = pneg %p45
      %p169 = pneg %p69
      %p170 = pneg %p66
      %p171 = pneg %p97
      %p172 = pneg %p94
      %s173 = smul.u32 16, %s20
      %p174 = scmp.lt.s32.totalorder %s19, 1
      %s175 = scalar_select %p174, %s19, 1
      %p176 = scmp.lt.s32.totalorder %s173, 15
      %s177 = scalar_select %p176, %s173, 15
      %s178 = smul.addr %s177, 2
      %s179 = smul.addr %s175, 32
      %s180 = sadd.s32 %s178, %s179
      %s181 = smul.addr %s180, 4
      %s182 = scalar_lea.vmem %s2, %s181
      %p183 = pneg %p125
      %p184 = pneg %p122
      %p185 = scmp.lt.s32.totalorder %s19, 1
      %s186 = scalar_select %p185, %s19, 1
      %p187 = scmp.lt.s32.totalorder %s20, 0
      %s188 = scalar_select %p187, %s20, 0
      %s189 = sadd.s32 %s188, %s186
      %s190 = smul.addr %s189, 2
      %s191 = scalar_lea.vmem %s3, %s190
      %p192 = scmp.lt.s32.totalorder %s19, 1
      %s193 = scalar_select %p192, %s19, 1
      %s194 = smul.addr %s193, 32
      %s195 = smul.addr %s194, 4
      %s196 = scalar_lea.vmem %s0, %s195
      %s197 = smul.u32 16, %s20
      %p198 = scmp.lt.s32.totalorder %s19, 1
      %s199 = scalar_select %p198, %s19, 1
      %p200 = scmp.lt.s32.totalorder %s197, 15
      %s201 = scalar_select %p200, %s197, 15
      %s202 = smul.addr %s201, 2
      %s203 = smul.addr %s199, 32
      %s204 = sadd.s32 %s202, %s203
      %s205 = smul.addr %s204, 4
      %s206 = scalar_lea.vmem %s2, %s205
      %s207 = smul.u32 16, %s20
      %p208 = scmp.lt.s32.totalorder %s19, 1
      %s209 = scalar_select %p208, %s19, 1
      %p210 = scmp.lt.s32.totalorder %s20, 0
      %s211 = scalar_select %p210, %s20, 0
      %s212 = sadd.s32 %s211, %s209
      %s213 = smul.addr %s212, 2
      %s214 = scalar_lea.vmem %s3, %s213
      %s216 = smul.u32 %s20, 16
      %s217 = smul.u32 %s216, 2
      %s218 = smul.addr %s217, 4
      %s219 = scalar_lea.vmem %s196, %s218
      %v220 = vld [vmem:[%s219] sm:$0xf]
      %v221 = vld [vmem:[%s219 + $0x4] sm:$0xf]
      %v222 = vld [vmem:[%s219 + $0x8] sm:$0xf]
      %v223 = vld [vmem:[%s219 + $0xc] sm:$0xf]
      %v224 = vld [vmem:[%s219 + $0x10] sm:$0xf]
      %v225 = vld [vmem:[%s219 + $0x14] sm:$0xf]
      %v226 = vld [vmem:[%s219 + $0x18] sm:$0xf]
      %v227 = vld [vmem:[%s219 + $0x1c] sm:$0xf]
      %v228 = vld [vmem:[%s219 + $0x20] sm:$0xf]
      %v229 = vld [vmem:[%s219 + $0x24] sm:$0xf]
      %v230 = vld [vmem:[%s219 + $0x28] sm:$0xf]
      %v231 = vld [vmem:[%s219 + $0x2c] sm:$0xf]
      %v232 = vld [vmem:[%s219 + $0x30] sm:$0xf]
      %v233 = vld [vmem:[%s219 + $0x34] sm:$0xf]
      %v234 = vld [vmem:[%s219 + $0x38] sm:$0xf]
      %v235 = vld [vmem:[%s219 + $0x3c] sm:$0xf]
      %v236 = vld [vmem:[%s219 + $0x40] sm:$0xf]
      %v237 = vld [vmem:[%s219 + $0x44] sm:$0xf]
      %v238 = vld [vmem:[%s219 + $0x48] sm:$0xf]
      %v239 = vld [vmem:[%s219 + $0x4c] sm:$0xf]
      %v240 = vld [vmem:[%s219 + $0x50] sm:$0xf]
      %v241 = vld [vmem:[%s219 + $0x54] sm:$0xf]
      %v242 = vld [vmem:[%s219 + $0x58] sm:$0xf]
      %v243 = vld [vmem:[%s219 + $0x5c] sm:$0xf]
      %v244 = vld [vmem:[%s219 + $0x60] sm:$0xf]
      %v245 = vld [vmem:[%s219 + $0x64] sm:$0xf]
      %v246 = vld [vmem:[%s219 + $0x68] sm:$0xf]
      %v247 = vld [vmem:[%s219 + $0x6c] sm:$0xf]
      %v248 = vld [vmem:[%s219 + $0x70] sm:$0xf]
      %v249 = vld [vmem:[%s219 + $0x74] sm:$0xf]
      %v250 = vld [vmem:[%s219 + $0x78] sm:$0xf]
      %v251 = vld [vmem:[%s219 + $0x7c] sm:$0xf]
      %v252 = vld [vmem:[%s1] sm:$0xf]
      %v253 = vld [vmem:[%s1 + $0x4] sm:$0xf]
      %v254 = vld [vmem:[%s1 + $0x8] sm:$0xf]
      %v255 = vld [vmem:[%s1 + $0xc] sm:$0xf]
      %v256 = vld [vmem:[%s1 + $0x10] sm:$0xf]
      %v257 = vld [vmem:[%s1 + $0x14] sm:$0xf]
      %v258 = vld [vmem:[%s1 + $0x18] sm:$0xf]
      %v259 = vld [vmem:[%s1 + $0x1c] sm:$0xf]
      %v260 = vld [vmem:[%s1 + $0x20] sm:$0xf]
      %v261 = vld [vmem:[%s1 + $0x24] sm:$0xf]
      %v262 = vld [vmem:[%s1 + $0x28] sm:$0xf]
      %v263 = vld [vmem:[%s1 + $0x2c] sm:$0xf]
      %v264 = vld [vmem:[%s1 + $0x30] sm:$0xf]
      %v265 = vld [vmem:[%s1 + $0x34] sm:$0xf]
      %v266 = vld [vmem:[%s1 + $0x38] sm:$0xf]
      %v267 = vld [vmem:[%s1 + $0x3c] sm:$0xf]
      %v300 = vunpack.c.l.b16 %v220
      %v301 = vunpack.c.l.b16 %v221
      %v302 = vunpack.c.l.b16 %v222
      %v303 = vunpack.c.l.b16 %v223
      %v304 = vunpack.c.l.b16 %v224
      %v305 = vunpack.c.l.b16 %v225
      %v306 = vunpack.c.l.b16 %v226
      %v307 = vunpack.c.l.b16 %v227
      %v308 = vunpack.c.l.b16 %v228
      %v309 = vunpack.c.l.b16 %v229
      %v310 = vunpack.c.l.b16 %v230
      %v311 = vunpack.c.l.b16 %v231
      %v312 = vunpack.c.l.b16 %v232
      %v313 = vunpack.c.l.b16 %v233
      %v314 = vunpack.c.l.b16 %v234
      %v315 = vunpack.c.l.b16 %v235
      %v316 = vunpack.c.l.b16 %v236
      %v317 = vunpack.c.l.b16 %v237
      %v318 = vunpack.c.l.b16 %v238
      %v319 = vunpack.c.l.b16 %v239
      %v320 = vunpack.c.l.b16 %v240
      %v321 = vunpack.c.l.b16 %v241
      %v322 = vunpack.c.l.b16 %v242
      %v323 = vunpack.c.l.b16 %v243
      %v324 = vunpack.c.l.b16 %v244
      %v325 = vunpack.c.l.b16 %v245
      %v326 = vunpack.c.l.b16 %v246
      %v327 = vunpack.c.l.b16 %v247
      %v328 = vunpack.c.l.b16 %v248
      %v329 = vunpack.c.l.b16 %v249
      %v330 = vunpack.c.l.b16 %v250
      %v331 = vunpack.c.l.b16 %v251
      %v332 = vpack.c.b16 %v301, %v300
      %v333 = vpack.c.b16 %v303, %v302
      %v334 = vpack.c.b16 %v305, %v304
      %v335 = vpack.c.b16 %v307, %v306
      %v336 = vpack.c.b16 %v309, %v308
      %v337 = vpack.c.b16 %v311, %v310
      %v338 = vpack.c.b16 %v313, %v312
      %v339 = vpack.c.b16 %v315, %v314
      %v340 = vpack.c.b16 %v317, %v316
      %v341 = vpack.c.b16 %v319, %v318
      %v342 = vpack.c.b16 %v321, %v320
      %v343 = vpack.c.b16 %v323, %v322
      %v344 = vpack.c.b16 %v325, %v324
      %v345 = vpack.c.b16 %v327, %v326
      %v346 = vpack.c.b16 %v329, %v328
      %v347 = vpack.c.b16 %v331, %v330
      %v380 = vunpack.c.l.b16 %v252
      %v381 = vunpack.c.l.b16 %v253
      %v382 = vunpack.c.l.b16 %v254
      %v383 = vunpack.c.l.b16 %v255
      %v384 = vunpack.c.l.b16 %v256
      %v385 = vunpack.c.l.b16 %v257
      %v386 = vunpack.c.l.b16 %v258
      %v387 = vunpack.c.l.b16 %v259
      %v388 = vunpack.c.l.b16 %v260
      %v389 = vunpack.c.l.b16 %v261
      %v390 = vunpack.c.l.b16 %v262
      %v391 = vunpack.c.l.b16 %v263
      %v392 = vunpack.c.l.b16 %v264
      %v393 = vunpack.c.l.b16 %v265
      %v394 = vunpack.c.l.b16 %v266
      %v395 = vunpack.c.l.b16 %v267
      %v396 = vpack.c.b16 %v381, %v380
      %v397 = vpack.c.b16 %v383, %v382
      %v398 = vpack.c.b16 %v385, %v384
      %v399 = vpack.c.b16 %v387, %v386
      %v400 = vpack.c.b16 %v389, %v388
      %v401 = vpack.c.b16 %v391, %v390
      %v402 = vpack.c.b16 %v393, %v392
      %v403 = vpack.c.b16 %v395, %v394
      %412 = vmatprep.subr.bf16.mxu0 0
      %413 = vmatpush1.bf16.msra.mxu0 %v396
      %414 = vmatprep.subr.bf16.mxu0 0
      %415 = vmatpush1.bf16.msra.mxu0 %v397
      %416 = vmatprep.subr.bf16.mxu0 0
      %417 = vmatpush1.bf16.msra.mxu0 %v398
      %418 = vmatprep.subr.bf16.mxu0 0
      %419 = vmatpush1.bf16.msra.mxu0 %v399
      %420 = vmatprep.subr.bf16.mxu0 0
      %421 = vmatpush1.bf16.msra.mxu0 %v400
      %422 = vmatprep.subr.bf16.mxu0 0
      %423 = vmatpush1.bf16.msra.mxu0 %v401
      %424 = vmatprep.subr.bf16.mxu0 0
      %425 = vmatpush1.bf16.msra.mxu0 %v402
      %426 = vmatprep.subr.bf16.mxu0 0
      %427 = vmatpush1.bf16.msra.mxu0 %v403
      %428 = vmatprep.subr.bf16.mxu0 0
      %429 = vmatpush1.bf16.msra.mxu0 0
      %430 = vmatprep.subr.bf16.mxu0 0
      %431 = vmatpush1.bf16.msra.mxu0 0
      %432 = vmatprep.subr.bf16.mxu0 0
      %433 = vmatpush1.bf16.msra.mxu0 0
      %434 = vmatprep.subr.bf16.mxu0 0
      %435 = vmatpush1.bf16.msra.mxu0 0
      %436 = vmatprep.subr.bf16.mxu0 0
      %437 = vmatpush1.bf16.msra.mxu0 0
      %438 = vmatprep.subr.bf16.mxu0 0
      %439 = vmatpush1.bf16.msra.mxu0 0
      %440 = vmatprep.subr.bf16.mxu0 0
      %441 = vmatpush1.bf16.msra.mxu0 0
      %442 = vmatprep.subr.bf16.mxu0 0
      %443 = vmatpush1.bf16.msra.mxu0 0
      %444 = vmatprep.mubr.bf16.mxu0 0
      %445 = vmatmul.mubr.bf16.gmra.mrb[0].mxu0 %v332
      %v446 = vpop.f32.mrb[0].mxu0
      %v447 = vadd.f32 0.0, %v446
      %v448 = vpop.f32.mrb[0].mxu0
      %v449 = vpop.f32.mrb[0].mxu0
      %v450 = vadd.f32 0.0, %v449
      %v451 = vpop.f32.mrb[0].mxu0
      %452 = vmatprep.mubr.bf16.mxu0 0
      %453 = vmatmul.mubr.bf16.gmra.mrb[0].mxu0 %v333
      %v454 = vpop.f32.mrb[0].mxu0
      %v455 = vadd.f32 0.0, %v454
      %v456 = vpop.f32.mrb[0].mxu0
      %v457 = vpop.f32.mrb[0].mxu0
      %v458 = vadd.f32 0.0, %v457
      %v459 = vpop.f32.mrb[0].mxu0
      %460 = vmatprep.mubr.bf16.mxu0 0
      %461 = vmatmul.mubr.bf16.gmra.mrb[0].mxu0 %v334
      %v462 = vpop.f32.mrb[0].mxu0
      %v463 = vadd.f32 0.0, %v462
      %v464 = vpop.f32.mrb[0].mxu0
      %v465 = vpop.f32.mrb[0].mxu0
      %v466 = vadd.f32 0.0, %v465
      %v467 = vpop.f32.mrb[0].mxu0
      %468 = vmatprep.mubr.bf16.mxu0 0
      %469 = vmatmul.mubr.bf16.gmra.mrb[0].mxu0 %v335
      %v470 = vpop.f32.mrb[0].mxu0
      %v471 = vadd.f32 0.0, %v470
      %v472 = vpop.f32.mrb[0].mxu0
      %v473 = vpop.f32.mrb[0].mxu0
      %v474 = vadd.f32 0.0, %v473
      %v475 = vpop.f32.mrb[0].mxu0
      %476 = vmatprep.mubr.bf16.mxu0 0
      %477 = vmatmul.mubr.bf16.gmra.mrb[0].mxu0 %v336
      %v478 = vpop.f32.mrb[0].mxu0
      %v479 = vadd.f32 0.0, %v478
      %v480 = vpop.f32.mrb[0].mxu0
      %v481 = vpop.f32.mrb[0].mxu0
      %v482 = vadd.f32 0.0, %v481
      %v483 = vpop.f32.mrb[0].mxu0
      %484 = vmatprep.mubr.bf16.mxu0 0
      %485 = vmatmul.mubr.bf16.gmra.mrb[0].mxu0 %v337
      %v486 = vpop.f32.mrb[0].mxu0
      %v487 = vadd.f32 0.0, %v486
      %v488 = vpop.f32.mrb[0].mxu0
      %v489 = vpop.f32.mrb[0].mxu0
      %v490 = vadd.f32 0.0, %v489
      %v491 = vpop.f32.mrb[0].mxu0
      %492 = vmatprep.mubr.bf16.mxu0 0
      %493 = vmatmul.mubr.bf16.gmra.mrb[0].mxu0 %v338
      %v494 = vpop.f32.mrb[0].mxu0
      %v495 = vadd.f32 0.0, %v494
      %v496 = vpop.f32.mrb[0].mxu0
      %v497 = vpop.f32.mrb[0].mxu0
      %v498 = vadd.f32 0.0, %v497
      %v499 = vpop.f32.mrb[0].mxu0
      %500 = vmatprep.mubr.bf16.mxu0 0
      %501 = vmatmul.mubr.bf16.gmra.mrb[0].mxu0 %v339
      %v502 = vpop.f32.mrb[0].mxu0
      %v503 = vadd.f32 0.0, %v502
      %v504 = vpop.f32.mrb[0].mxu0
      %v505 = vpop.f32.mrb[0].mxu0
      %v506 = vadd.f32 0.0, %v505
      %v507 = vpop.f32.mrb[0].mxu0
      %508 = vmatprep.mubr.bf16.mxu0 0
      %509 = vmatmul.mubr.bf16.gmra.mrb[0].mxu0 %v340
      %v510 = vpop.f32.mrb[0].mxu0
      %v511 = vadd.f32 0.0, %v510
      %v512 = vpop.f32.mrb[0].mxu0
      %v513 = vpop.f32.mrb[0].mxu0
      %v514 = vadd.f32 0.0, %v513
      %v515 = vpop.f32.mrb[0].mxu0
      %516 = vmatprep.mubr.bf16.mxu0 0
      %517 = vmatmul.mubr.bf16.gmra.mrb[0].mxu0 %v341
      %v518 = vpop.f32.mrb[0].mxu0
      %v519 = vadd.f32 0.0, %v518
      %v520 = vpop.f32.mrb[0].mxu0
      %v521 = vpop.f32.mrb[0].mxu0
      %v522 = vadd.f32 0.0, %v521
      %v523 = vpop.f32.mrb[0].mxu0
      %524 = vmatprep.mubr.bf16.mxu0 0
      %525 = vmatmul.mubr.bf16.gmra.mrb[0].mxu0 %v342
      %v526 = vpop.f32.mrb[0].mxu0
      %v527 = vadd.f32 0.0, %v526
      %v528 = vpop.f32.mrb[0].mxu0
      %v529 = vpop.f32.mrb[0].mxu0
      %v530 = vadd.f32 0.0, %v529
      %v531 = vpop.f32.mrb[0].mxu0
      %532 = vmatprep.mubr.bf16.mxu0 0
      %533 = vmatmul.mubr.bf16.gmra.mrb[0].mxu0 %v343
      %v534 = vpop.f32.mrb[0].mxu0
      %v535 = vadd.f32 0.0, %v534
      %v536 = vpop.f32.mrb[0].mxu0
      %v537 = vpop.f32.mrb[0].mxu0
      %v538 = vadd.f32 0.0, %v537
      %v539 = vpop.f32.mrb[0].mxu0
      %540 = vmatprep.mubr.bf16.mxu0 0
      %541 = vmatmul.mubr.bf16.gmra.mrb[0].mxu0 %v344
      %v542 = vpop.f32.mrb[0].mxu0
      %v543 = vadd.f32 0.0, %v542
      %v544 = vpop.f32.mrb[0].mxu0
      %v545 = vpop.f32.mrb[0].mxu0
      %v546 = vadd.f32 0.0, %v545
      %v547 = vpop.f32.mrb[0].mxu0
      %548 = vmatprep.mubr.bf16.mxu0 0
      %549 = vmatmul.mubr.bf16.gmra.mrb[0].mxu0 %v345
      %v550 = vpop.f32.mrb[0].mxu0
      %v551 = vadd.f32 0.0, %v550
      %v552 = vpop.f32.mrb[0].mxu0
      %v553 = vpop.f32.mrb[0].mxu0
      %v554 = vadd.f32 0.0, %v553
      %v555 = vpop.f32.mrb[0].mxu0
      %556 = vmatprep.mubr.bf16.mxu0 0
      %557 = vmatmul.mubr.bf16.gmra.mrb[0].mxu0 %v346
      %v558 = vpop.f32.mrb[0].mxu0
      %v559 = vadd.f32 0.0, %v558
      %v560 = vpop.f32.mrb[0].mxu0
      %v561 = vpop.f32.mrb[0].mxu0
      %v562 = vadd.f32 0.0, %v561
      %v563 = vpop.f32.mrb[0].mxu0
      %564 = vmatprep.mubr.bf16.mxu0 0
      %565 = vmatmul.mubr.bf16.gmra.mrb[0].mxu0 %v347
      %v566 = vpop.f32.mrb[0].mxu0
      %v567 = vadd.f32 0.0, %v566
      %v568 = vpop.f32.mrb[0].mxu0
      %v569 = vpop.f32.mrb[0].mxu0
      %v570 = vadd.f32 0.0, %v569
      %v571 = vpop.f32.mrb[0].mxu0
      %572 = vdwg.mxu0
      %v573 = vpack.c.bf16 %v450, %v447
      %v574 = vpack.c.bf16 %v458, %v455
      %v575 = vpack.c.bf16 %v466, %v463
      %v576 = vpack.c.bf16 %v474, %v471
      %v577 = vpack.c.bf16 %v482, %v479
      %v578 = vpack.c.bf16 %v490, %v487
      %v579 = vpack.c.bf16 %v498, %v495
      %v580 = vpack.c.bf16 %v506, %v503
      %v581 = vpack.c.bf16 %v514, %v511
      %v582 = vpack.c.bf16 %v522, %v519
      %v583 = vpack.c.bf16 %v530, %v527
      %v584 = vpack.c.bf16 %v538, %v535
      %v585 = vpack.c.bf16 %v546, %v543
      %v586 = vpack.c.bf16 %v554, %v551
      %v587 = vpack.c.bf16 %v562, %v559
      %v588 = vpack.c.bf16 %v570, %v567
      %v605 = vunpack.c.l.b16 %v573
      %v606 = vunpack.c.h.b16 %v573
      %v607 = vunpack.c.l.b16 %v574
      %v608 = vunpack.c.h.b16 %v574
      %v609 = vunpack.c.l.b16 %v575
      %v610 = vunpack.c.h.b16 %v575
      %v611 = vunpack.c.l.b16 %v576
      %v612 = vunpack.c.h.b16 %v576
      %v613 = vunpack.c.l.b16 %v577
      %v614 = vunpack.c.h.b16 %v577
      %v615 = vunpack.c.l.b16 %v578
      %v616 = vunpack.c.h.b16 %v578
      %v617 = vunpack.c.l.b16 %v579
      %v618 = vunpack.c.h.b16 %v579
      %v619 = vunpack.c.l.b16 %v580
      %v620 = vunpack.c.h.b16 %v580
      %v621 = vunpack.c.l.b16 %v581
      %v622 = vunpack.c.h.b16 %v581
      %v623 = vunpack.c.l.b16 %v582
      %v624 = vunpack.c.h.b16 %v582
      %v625 = vunpack.c.l.b16 %v583
      %v626 = vunpack.c.h.b16 %v583
      %v627 = vunpack.c.l.b16 %v584
      %v628 = vunpack.c.h.b16 %v584
      %v629 = vunpack.c.l.b16 %v585
      %v630 = vunpack.c.h.b16 %v585
      %v631 = vunpack.c.l.b16 %v586
      %v632 = vunpack.c.h.b16 %v586
      %v633 = vunpack.c.l.b16 %v587
      %v634 = vunpack.c.h.b16 %v587
      %v635 = vunpack.c.l.b16 %v588
      %v636 = vunpack.c.h.b16 %v588
      %v637 = vpack.c.b16 %v605, %v605
      %v638 = vpack.c.b16 %v606, %v606
      %v639 = vpack.c.b16 %v607, %v607
      %v640 = vpack.c.b16 %v608, %v608
      %v641 = vpack.c.b16 %v609, %v609
      %v642 = vpack.c.b16 %v610, %v610
      %v643 = vpack.c.b16 %v611, %v611
      %v644 = vpack.c.b16 %v612, %v612
      %v645 = vpack.c.b16 %v613, %v613
      %v646 = vpack.c.b16 %v614, %v614
      %v647 = vpack.c.b16 %v615, %v615
      %v648 = vpack.c.b16 %v616, %v616
      %v649 = vpack.c.b16 %v617, %v617
      %v650 = vpack.c.b16 %v618, %v618
      %v651 = vpack.c.b16 %v619, %v619
      %v652 = vpack.c.b16 %v620, %v620
      %v653 = vpack.c.b16 %v621, %v621
      %v654 = vpack.c.b16 %v622, %v622
      %v655 = vpack.c.b16 %v623, %v623
      %v656 = vpack.c.b16 %v624, %v624
      %v657 = vpack.c.b16 %v625, %v625
      %v658 = vpack.c.b16 %v626, %v626
      %v659 = vpack.c.b16 %v627, %v627
      %v660 = vpack.c.b16 %v628, %v628
      %v661 = vpack.c.b16 %v629, %v629
      %v662 = vpack.c.b16 %v630, %v630
      %v663 = vpack.c.b16 %v631, %v631
      %v664 = vpack.c.b16 %v632, %v632
      %v665 = vpack.c.b16 %v633, %v633
      %v666 = vpack.c.b16 %v634, %v634
      %v667 = vpack.c.b16 %v635, %v635
      %v668 = vpack.c.b16 %v636, %v636
      %701 = vst [vmem:[%s206] sm:$0xf] %v637
      %702 = vst [vmem:[%s206 + $0x4] sm:$0xf] %v638
      %703 = vst [vmem:[%s206 + $0x8] sm:$0xf] %v639
      %704 = vst [vmem:[%s206 + $0xc] sm:$0xf] %v640
      %705 = vst [vmem:[%s206 + $0x10] sm:$0xf] %v641
      %706 = vst [vmem:[%s206 + $0x14] sm:$0xf] %v642
      %707 = vst [vmem:[%s206 + $0x18] sm:$0xf] %v643
      %708 = vst [vmem:[%s206 + $0x1c] sm:$0xf] %v644
      %709 = vst [vmem:[%s206 + $0x20] sm:$0xf] %v645
      %710 = vst [vmem:[%s206 + $0x24] sm:$0xf] %v646
      %711 = vst [vmem:[%s206 + $0x28] sm:$0xf] %v647
      %712 = vst [vmem:[%s206 + $0x2c] sm:$0xf] %v648
      %713 = vst [vmem:[%s206 + $0x30] sm:$0xf] %v649
      %714 = vst [vmem:[%s206 + $0x34] sm:$0xf] %v650
      %715 = vst [vmem:[%s206 + $0x38] sm:$0xf] %v651
      %716 = vst [vmem:[%s206 + $0x3c] sm:$0xf] %v652
      %717 = vst [vmem:[%s206 + $0x40] sm:$0xf] %v653
      %718 = vst [vmem:[%s206 + $0x44] sm:$0xf] %v654
      %719 = vst [vmem:[%s206 + $0x48] sm:$0xf] %v655
      %720 = vst [vmem:[%s206 + $0x4c] sm:$0xf] %v656
      %721 = vst [vmem:[%s206 + $0x50] sm:$0xf] %v657
      %722 = vst [vmem:[%s206 + $0x54] sm:$0xf] %v658
      %723 = vst [vmem:[%s206 + $0x58] sm:$0xf] %v659
      %724 = vst [vmem:[%s206 + $0x5c] sm:$0xf] %v660
      %725 = vst [vmem:[%s206 + $0x60] sm:$0xf] %v661
      %726 = vst [vmem:[%s206 + $0x64] sm:$0xf] %v662
      %727 = vst [vmem:[%s206 + $0x68] sm:$0xf] %v663
      %728 = vst [vmem:[%s206 + $0x6c] sm:$0xf] %v664
      %729 = vst [vmem:[%s206 + $0x70] sm:$0xf] %v665
      %730 = vst [vmem:[%s206 + $0x74] sm:$0xf] %v666
      %731 = vst [vmem:[%s206 + $0x78] sm:$0xf] %v667
      %732 = vst [vmem:[%s206 + $0x7c] sm:$0xf] %v668
      %v733 = vadd.f32 %v447, %v450
      %v734 = vadd.f32 %v733, %v455
      %v735 = vadd.f32 %v734, %v458
      %v736 = vadd.f32 %v735, %v463
      %v737 = vadd.f32 %v736, %v466
      %v738 = vadd.f32 %v737, %v471
      %v739 = vadd.f32 %v738, %v474
      %v740 = vadd.f32 %v739, %v479
      %v741 = vadd.f32 %v740, %v482
      %v742 = vadd.f32 %v741, %v487
      %v743 = vadd.f32 %v742, %v490
      %v744 = vadd.f32 %v743, %v495
      %v745 = vadd.f32 %v744, %v498
      %v746 = vadd.f32 %v745, %v503
      %v747 = vadd.f32 %v746, %v506
      %v748 = vadd.f32 %v747, %v511
      %v749 = vadd.f32 %v748, %v514
      %v750 = vadd.f32 %v749, %v519
      %v751 = vadd.f32 %v750, %v522
      %v752 = vadd.f32 %v751, %v527
      %v753 = vadd.f32 %v752, %v530
      %v754 = vadd.f32 %v753, %v535
      %v755 = vadd.f32 %v754, %v538
      %v756 = vadd.f32 %v755, %v543
      %v757 = vadd.f32 %v756, %v546
      %v758 = vadd.f32 %v757, %v551
      %v759 = vadd.f32 %v758, %v554
      %v760 = vadd.f32 %v759, %v559
      %v761 = vadd.f32 %v760, %v562
      %v762 = vadd.f32 %v761, %v567
      %v763 = vadd.f32 %v762, %v570
      %v764 = vrot.slane %v763, 4
      %v765 = vadd.f32 %v763, %v764
      %v766 = vrot.slane %v765, 2
      %v767 = vadd.f32 %v765, %v766
      %v768 = vrot.slane %v767, 1
      %v769 = vadd.f32 %v767, %v768
      %v770 = vrcp.pop 256.0
      %v771 = vmul.f32 %v769, %v770
      %v772 = vsub.f32 %v447, %v771
      %v773 = vsub.f32 %v450, %v771
      %v774 = vsub.f32 %v455, %v771
      %v775 = vsub.f32 %v458, %v771
      %v776 = vsub.f32 %v463, %v771
      %v777 = vsub.f32 %v466, %v771
      %v778 = vsub.f32 %v471, %v771
      %v779 = vsub.f32 %v474, %v771
      %v780 = vsub.f32 %v479, %v771
      %v781 = vsub.f32 %v482, %v771
      %v782 = vsub.f32 %v487, %v771
      %v783 = vsub.f32 %v490, %v771
      %v784 = vsub.f32 %v495, %v771
      %v785 = vsub.f32 %v498, %v771
      %v786 = vsub.f32 %v503, %v771
      %v787 = vsub.f32 %v506, %v771
      %v788 = vsub.f32 %v511, %v771
      %v789 = vsub.f32 %v514, %v771
      %v790 = vsub.f32 %v519, %v771
      %v791 = vsub.f32 %v522, %v771
      %v792 = vsub.f32 %v527, %v771
      %v793 = vsub.f32 %v530, %v771
      %v794 = vsub.f32 %v535, %v771
      %v795 = vsub.f32 %v538, %v771
      %v796 = vsub.f32 %v543, %v771
      %v797 = vsub.f32 %v546, %v771
      %v798 = vsub.f32 %v551, %v771
      %v799 = vsub.f32 %v554, %v771
      %v800 = vsub.f32 %v559, %v771
      %v801 = vsub.f32 %v562, %v771
      %v802 = vsub.f32 %v567, %v771
      %v803 = vsub.f32 %v570, %v771
      %v804 = vmul.f32 %v772, %v772
      %v805 = vmul.f32 %v773, %v773
      %v806 = vmul.f32 %v774, %v774
      %v807 = vmul.f32 %v775, %v775
      %v808 = vmul.f32 %v776, %v776
      %v809 = vmul.f32 %v777, %v777
      %v810 = vmul.f32 %v778, %v778
      %v811 = vmul.f32 %v779, %v779
      %v812 = vmul.f32 %v780, %v780
      %v813 = vmul.f32 %v781, %v781
      %v814 = vmul.f32 %v782, %v782
      %v815 = vmul.f32 %v783, %v783
      %v816 = vmul.f32 %v784, %v784
      %v817 = vmul.f32 %v785, %v785
      %v818 = vmul.f32 %v786, %v786
      %v819 = vmul.f32 %v787, %v787
      %v820 = vmul.f32 %v788, %v788
      %v821 = vmul.f32 %v789, %v789
      %v822 = vmul.f32 %v790, %v790
      %v823 = vmul.f32 %v791, %v791
      %v824 = vmul.f32 %v792, %v792
      %v825 = vmul.f32 %v793, %v793
      %v826 = vmul.f32 %v794, %v794
      %v827 = vmul.f32 %v795, %v795
      %v828 = vmul.f32 %v796, %v796
      %v829 = vmul.f32 %v797, %v797
      %v830 = vmul.f32 %v798, %v798
      %v831 = vmul.f32 %v799, %v799
      %v832 = vmul.f32 %v800, %v800
      %v833 = vmul.f32 %v801, %v801
      %v834 = vmul.f32 %v802, %v802
      %v835 = vmul.f32 %v803, %v803
      %v836 = vadd.f32 %v804, %v805
      %v837 = vadd.f32 %v836, %v806
      %v838 = vadd.f32 %v837, %v807
      %v839 = vadd.f32 %v838, %v808
      %v840 = vadd.f32 %v839, %v809
      %v841 = vadd.f32 %v840, %v810
      %v842 = vadd.f32 %v841, %v811
      %v843 = vadd.f32 %v842, %v812
      %v844 = vadd.f32 %v843, %v813
      %v845 = vadd.f32 %v844, %v814
      %v846 = vadd.f32 %v845, %v815
      %v847 = vadd.f32 %v846, %v816
      %v848 = vadd.f32 %v847, %v817
      %v849 = vadd.f32 %v848, %v818
      %v850 = vadd.f32 %v849, %v819
      %v851 = vadd.f32 %v850, %v820
      %v852 = vadd.f32 %v851, %v821
      %v853 = vadd.f32 %v852, %v822
      %v854 = vadd.f32 %v853, %v823
      %v855 = vadd.f32 %v854, %v824
      %v856 = vadd.f32 %v855, %v825
      %v857 = vadd.f32 %v856, %v826
      %v858 = vadd.f32 %v857, %v827
      %v859 = vadd.f32 %v858, %v828
      %v860 = vadd.f32 %v859, %v829
      %v861 = vadd.f32 %v860, %v830
      %v862 = vadd.f32 %v861, %v831
      %v863 = vadd.f32 %v862, %v832
      %v864 = vadd.f32 %v863, %v833
      %v865 = vadd.f32 %v864, %v834
      %v866 = vadd.f32 %v865, %v835
      %v867 = vrot.slane %v866, 4
      %v868 = vadd.f32 %v866, %v867
      %v869 = vrot.slane %v868, 2
      %v870 = vadd.f32 %v868, %v869
      %v871 = vrot.slane %v870, 1
      %v872 = vadd.f32 %v870, %v871
      %873 = vst [vmem:[%s214] sm:$0x1] %v769
      %874 = vst [vmem:[%s214 + $0x1] sm:$0x1] %v872
      %s875 = smul.u32 16, %s20
      %p876 = scmp.lt.s32.totalorder %s19, 1
      %s877 = scalar_select %p876, %s19, 1
      %p878 = scmp.lt.s32.totalorder %s875, 15
      %s879 = scalar_select %p878, %s875, 15
      %s880 = smul.addr %s879, 2
      %s881 = smul.addr %s877, 32
      %s882 = sadd.s32 %s880, %s881
      %s883 = smul.addr %s882, 4
      %s884 = scalar_lea.vmem %s2, %s883
      %p885 = scmp.lt.s32.totalorder %s19, 1
      %s886 = scalar_select %p885, %s19, 1
      %p887 = scmp.lt.s32.totalorder %s20, 0
      %s888 = scalar_select %p887, %s20, 0
      %s889 = sadd.s32 %s888, %s886
      %s890 = smul.addr %s889, 2
      %s891 = scalar_lea.vmem %s3, %s890
      // Predicated region
      $region29: #{aspp_module_forward.2} parent=27 // pred_check
        %p892 = pneg %p94
      $region30: #{aspp_module_forward.2} parent=27 // pred_check_branch
        %894 = sbr.rel (%p892) target = $region32
      $region31: #{aspp_module_forward.2} parent=27 // pred_region
        %s895 = smul.u32 16, %s20
      $region32: #{aspp_module_forward.2} parent=27 // pred_fallthru
        _
      // Predicated region
      $region33: #{aspp_module_forward.2} parent=27 // pred_check
        %p896 = pneg %p122
      $region34: #{aspp_module_forward.2} parent=27 // pred_check_branch
        %898 = sbr.rel (%p896) target = $region36
      $region35: #{aspp_module_forward.2} parent=27 // pred_region
        _
      $region36: #{aspp_module_forward.2} parent=27 // pred_fallthru
        _
    $region28: #{aspp_module_forward.2} parent=5 // pred_fallthru
      _
    %p899 = scmp.le.s32.totalorder 2, %s10
    // Predicated region
    $region37: #{aspp_module_forward.2} parent=5 // pred_check
      %p900 = pneg %p899
    $region38: #{aspp_module_forward.2} parent=5 // pred_check_branch
      %902 = sbr.rel (%p900) target = $region40
    $region39: #{aspp_module_forward.2} parent=5 // pred_region
      %s903 = ssub.s32 %s10, 2
      // Predicated region
      $region41: #{aspp_module_forward.2} parent=39 // pred_check
        %p904 = pneg %p100
      $region42: #{aspp_module_forward.2} parent=39 // pred_check_branch
        %906 = sbr.rel (%p904) target = $region44
      $region43: #{aspp_module_forward.2} parent=39 // pred_region
        %s907 = smul.u32 16, %s22
        %p908 = scmp.lt.s32.totalorder %s21, 1
        %s909 = scalar_select %p908, %s21, 1
        %p910 = scmp.lt.s32.totalorder %s907, 15
        %s911 = scalar_select %p910, %s907, 15
        %s912 = smul.addr %s911, 2
        %s913 = smul.addr %s909, 32
        %s914 = sadd.s32 %s912, %s913
        %s915 = smul.addr %s914, 4
        %s916 = scalar_lea.vmem %s2, %s915
      $region44: #{aspp_module_forward.2} parent=39 // pred_fallthru
        _
      // Predicated region
      $region45: #{aspp_module_forward.2} parent=39 // pred_check
        %p917 = pneg %p128
      $region46: #{aspp_module_forward.2} parent=39 // pred_check_branch
        %919 = sbr.rel (%p917) target = $region48
      $region47: #{aspp_module_forward.2} parent=39 // pred_region
        %p920 = scmp.lt.s32.totalorder %s21, 1
        %s921 = scalar_select %p920, %s21, 1
        %p922 = scmp.lt.s32.totalorder %s22, 0
        %s923 = scalar_select %p922, %s22, 0
        %s924 = sadd.s32 %s923, %s921
        %s925 = smul.addr %s924, 2
        %s926 = scalar_lea.vmem %s3, %s925
      $region48: #{aspp_module_forward.2} parent=39 // pred_fallthru
        _
    $region40: #{aspp_module_forward.2} parent=5 // pred_fallthru
      _
  $region6: #{aspp_module_forward.2} parent=0 // loop_footer
    %s14 = sadd.s32 1, %s10
  $region7: #{aspp_module_forward.2} parent=0 // loop_footer_branch
    %9 = sbr.rel target = $region3
  $region8: #{aspp_module_forward.2} parent=0 // loop_exit
    _

</llo_original>
